<compile_context>
chip_gen: v6e
topology: v6e:2x2x1
jax: 0.10.0
libtpu: 0.0.40
codegen_flags: <defaults>
</compile_context>

<pallas_src>
from functools import partial

import jax
import jax.numpy as jnp
from jax.experimental import pallas as pl
from jax.experimental.pallas import tpu as pltpu


def _resdwc_kernel(x_ref, p_ref, o_ref, xpad_ref, *, K, H, W, TH):
    # x_ref    : (H, W, tc)          input tile (C on lanes, W on sublanes, H outer)
    # p_ref    : (K*K + 1, tc) f32   rows 0..K*K-1 = taps (residual folded into the
    #                                centre tap), row K*K = bias
    # o_ref    : (H, W, tc)          output tile = conv(x) + bias + x
    # xpad_ref : (H + 2*pad, W, tc)  staging scratch with *vertical* zero halo only,
    #                                kept in the input dtype
    pad = K // 2
    tc = x_ref.shape[-1]
    Hp = H + 2 * pad
    n_strips = H // TH

    # --- Stage the tile. Scratch persists across grid steps, so the halo rows
    # are re-zeroed every step; they are tiny, full-width, aligned stores.
    zrows = jnp.zeros((pad, W, tc), dtype=xpad_ref.dtype)
    xpad_ref[0:pad, :, :] = zrows
    xpad_ref[Hp - pad:Hp, :, :] = zrows
    # W-offset 0 and H-offset only on the outer axis -> unmasked full-width vst.
    xpad_ref[pad:pad + H, :, :] = x_ref[...]

    # Column index used to wipe the wrapped column of the W rolls (keeps the
    # circular shift equivalent to a zero halo).
    col = jax.lax.broadcasted_iota(jnp.int32, (1, W, 1), 1)

    def strip(s, carry):
        r0 = pl.multiple_of(s * TH, TH)               # output-row offset of this strip
        # (TH + 2*pad, W, tc) slab incl. the vertical halo; the offset is on the
        # outer axis only -> pure addressing.  Single upcast per strip.
        slab = xpad_ref[pl.ds(r0, TH + 2 * pad), :, :].astype(jnp.float32)

        # W-shift variants (one per kw), built once per strip and reused for
        # every kh tap row.  variant[w] = slab[w - sh], zero outside the image.
        variants = []
        for kw in range(K):
            sh = pad - kw
            if sh == 0:
                variants.append(slab)
                continue
            v = pltpu.roll(slab, shift=sh % W, axis=1)     # XLU sublane rotate
            if sh > 0:
                v = jnp.where(col < sh, 0.0, v)            # wrapped left edge -> 0
            else:
                v = jnp.where(col >= W + sh, 0.0, v)       # wrapped right edge -> 0
            variants.append(v)

        # Bias in the accumulator init; the residual is the +1 folded into the
        # centre tap, so the loop below is exactly K*K fused MACs.
        acc = jnp.broadcast_to(p_ref[K * K, :][None, None, :], (TH, W, tc))
        for kh in range(K):
            for kw in range(K):
                wt = p_ref[kh * K + kw, :]                 # (tc,) f32 lane vector
                # kh slices an outer axis of a value -> free addressing.
                acc = acc + wt * variants[kw][kh:kh + TH, :, :]

        o_ref[pl.ds(r0, TH), :, :] = acc.astype(o_ref.dtype)
        return carry

    jax.lax.fori_loop(0, n_strips, strip, 0, unroll=True)


def _vmem_limit_bytes():
    """Per-generation VMEM limit (None -> keep the compiler default)."""
    try:
        cap = int(pltpu.get_tpu_info().vmem_capacity_bytes)
    except Exception:
        return None
    # ~75% of physical VMEM, capped; leaves headroom for compiler temporaries.
    return min(int(cap * 3 // 4), 100 * 1024 * 1024)


def _pick_c_tile(C, H, W, pad, x_bytes, th, budget_bytes):
    """Largest lane-dense (multiple-of-128) channel tile whose double-buffered
    blocks + staging scratch + per-strip temporaries fit the VMEM budget."""

    def footprint(tc):
        blk = H * W * tc * x_bytes                       # one (H, W, tc) block
        scratch = (H + 2 * pad) * W * tc * x_bytes       # haloed staging scratch
        temps = 4 * (th + 2 * pad) * W * tc * 4          # rolled variants + acc (f32)
        return 2 * blk + 2 * blk + scratch + temps       # in + out double-buffered

    if C % 128 == 0:
        for d in sorted((d for d in range(128, C + 1, 128) if C % d == 0),
                        reverse=True):
            if footprint(d) <= budget_bytes:
                return d
        return 128   # smallest lane-dense tile; rely on vmem_limit headroom
    # TODO(synk): for C < 128, fold spatial W into the lane axis instead of
    # running lane-sparse; the tiny demo (C=4) inevitably underfills lanes.
    return C


def res_dwc_nhwc(x, w, b, kernel_size=3, c_tile=None, strip_rows=8):
    """ResDWC.forward on an NHWC tensor: depthwise conv(x) + bias + x.

    x : (N, H, W, C)
    w : (C, K, K)   depthwise weights (PyTorch conv.weight squeezed over in-ch)
    b : (C,)        bias
    """
    N, H, W, C = x.shape
    K = kernel_size
    pad = K // 2

    # Row-strip height: largest divisor of H that is <= strip_rows.
    th = max(d for d in range(1, min(H, strip_rows) + 1) if H % d == 0)

    # Folded parameters (f32, lane-dense): rows 0..K*K-1 = taps with +1 on the
    # centre tap (the residual), row K*K = bias.
    w2 = jnp.transpose(jnp.reshape(w.astype(jnp.float32), (C, K * K)))   # (K*K, C)
    w2 = w2.at[pad * K + pad].add(1.0)
    params = jnp.concatenate([w2, b.astype(jnp.float32)[None, :]], axis=0)

    vmem_limit = _vmem_limit_bytes()
    budget = int((vmem_limit or 32 * 1024 * 1024) * 0.6)
    x_bytes = jnp.dtype(x.dtype).itemsize

    tc = c_tile if c_tile is not None else _pick_c_tile(C, H, W, pad, x_bytes,
                                                        th, budget)
    assert C % tc == 0, f"channel tile {tc} must divide C={C}"
    assert tc == C or tc % 128 == 0, (
        f"channel tile {tc} would be lane-sparse; use a multiple of 128 or tc == C")

    # TODO(synk): add an H row-strip grid axis (overlapping 1-row halo via
    # manual DMA from a pl.ANY ref) so huge H*W planes with C <= 128 do not
    # have to fit VMEM as a single block and v7x gets more parallel grid points.

    kernel = partial(_resdwc_kernel, K=K, H=H, W=W, TH=th)
    io_bytes = 2 * x.size * x_bytes + params.size * 4

    return pl.pallas_call(
        kernel,
        out_shape=jax.ShapeDtypeStruct((N, H, W, C), x.dtype),
        grid=(N, C // tc),
        in_specs=[
            # one (H, W, tc) tile per grid step; batch dim squeezed away
            pl.BlockSpec((pl.Squeezed(), H, W, tc), lambda n, c: (n, 0, 0, c)),
            # per-tile slice of the folded parameters
            pl.BlockSpec((K * K + 1, tc), lambda n, c: (0, c)),
        ],
        out_specs=pl.BlockSpec((pl.Squeezed(), H, W, tc), lambda n, c: (n, 0, 0, c)),
        scratch_shapes=[pltpu.VMEM((H + 2 * pad, W, tc), x.dtype)],
        compiler_params=pltpu.CompilerParams(
            dimension_semantics=("parallel", "parallel"),
            vmem_limit_bytes=vmem_limit),
        cost_estimate=pl.CostEstimate(
            flops=2 * K * K * N * C * H * W,
            transcendentals=0,
            bytes_accessed=io_bytes),
    )(x, params)


def res_dwc_nchw(x, w, b, kernel_size=3):
    """Convenience wrapper matching the PyTorch NCHW convention.

    In the real model the surrounding ops would keep activations in the
    lane-dense NHWC layout; these transposes are XLA glue for the NCHW API.
    """
    x_nhwc = jnp.transpose(x, (0, 2, 3, 1))
    y = res_dwc_nhwc(x_nhwc, w, b, kernel_size=kernel_size)
    return jnp.transpose(y, (0, 3, 1, 2))


def _reference_nchw(x, w, b):
    """Pure-JAX reference (lax depthwise conv) for correctness checking."""
    C = x.shape[1]
    out = jax.lax.conv_general_dilated(
        x, w[:, None, :, :],
        window_strides=(1, 1), padding="SAME",
        dimension_numbers=("NCHW", "OIHW", "NCHW"),
        feature_group_count=C)
    return out + b[None, :, None, None] + x


if __name__ == "__main__":
    # Small shapes consistent with the module: dim=4 channels, 16x16 spatial.
    N, C, H, W, K = 2, 4, 16, 16, 3

    key = jax.random.PRNGKey(0)
    kx, kw, kb = jax.random.split(key, 3)
    x = jax.random.normal(kx, (N, C, H, W), dtype=jnp.float32)
    # Deterministic synthetic parameters (Conv2d(dim, dim, 3, groups=dim)):
    # weight stored squeezed as (dim, K, K); bias (dim,).
    fan_in = K * K
    w = jax.random.uniform(kw, (C, K, K), dtype=jnp.float32,
                           minval=-1.0, maxval=1.0) / fan_in
    b = jax.random.uniform(kb, (C,), dtype=jnp.float32,
                           minval=-1.0, maxval=1.0) / fan_in

    out = jax.block_until_ready(res_dwc_nchw(x, w, b, kernel_size=K))

    ref = _reference_nchw(x, w, b)
    assert out.shape == (N, C, H, W)
    assert jnp.allclose(out, ref, atol=1e-5, rtol=1e-5), "mismatch vs reference"

    print("KERNEL_OK")
</pallas_src>

<mosaic_0001>
module attributes {stable_mosaic.version = 11 : i64} {
  func.func @_resdwc_kernel(%arg0: i32, %arg1: i32, %arg2: memref<1x16x16x4xf32, #tpu.memory_space<vmem>>, %arg3: memref<10x4xf32, #tpu.memory_space<vmem>>, %arg4: memref<1x16x16x4xf32, #tpu.memory_space<vmem>>, %arg5: memref<18x16x4xf32, #tpu.memory_space<vmem>>) attributes {dimension_semantics = [#tpu.dimension_semantics<parallel>, #tpu.dimension_semantics<parallel>], iteration_bounds = array<i64: 2, 1>, scalar_prefetch = 0 : i64, scratch_operands = 1 : i64, tpu.core_type = #tpu.core_type<tc>, window_params = [{transform_indices = @transform_0, window_bounds = array<i64: 1, 16, 16, 4>}, {transform_indices = @transform_1, window_bounds = array<i64: 10, 4>}, {transform_indices = @transform_2, window_bounds = array<i64: 1, 16, 16, 4>}]} {
    %cst = arith.constant 0.000000e+00 : f32
    %0 = vector.broadcast %cst : f32 to vector<1x16x4xf32>
    %c0 = arith.constant 0 : index
    %c0_0 = arith.constant 0 : index
    %c0_1 = arith.constant 0 : index
    %1 = vector.load %arg5[%c0, %c0_0, %c0_1] : memref<18x16x4xf32, #tpu.memory_space<vmem>>, vector<1x16x4xf32>
    tpu.vector_store %arg5[%c0, %c0_0, %c0_1], %0 {strides = array<i32>} : memref<18x16x4xf32, #tpu.memory_space<vmem>>, vector<1x16x4xf32>,
    %c17 = arith.constant 17 : index
    %c0_2 = arith.constant 0 : index
    %c0_3 = arith.constant 0 : index
    %2 = vector.load %arg5[%c17, %c0_2, %c0_3] : memref<18x16x4xf32, #tpu.memory_space<vmem>>, vector<1x16x4xf32>
    tpu.vector_store %arg5[%c17, %c0_2, %c0_3], %0 {strides = array<i32>} : memref<18x16x4xf32, #tpu.memory_space<vmem>>, vector<1x16x4xf32>,
    %c0_4 = arith.constant 0 : index
    %c0_5 = arith.constant 0 : index
    %c0_6 = arith.constant 0 : index
    %c0_7 = arith.constant 0 : index
    %3 = vector.load %arg2[%c0_4, %c0_5, %c0_6, %c0_7] : memref<1x16x16x4xf32, #tpu.memory_space<vmem>>, vector<1x16x16x4xf32>
    %4 = vector.shape_cast %3 : vector<1x16x16x4xf32> to vector<16x16x4xf32>
    %c1 = arith.constant 1 : index
    %c0_8 = arith.constant 0 : index
    %c0_9 = arith.constant 0 : index
    %5 = vector.load %arg5[%c1, %c0_8, %c0_9] : memref<18x16x4xf32, #tpu.memory_space<vmem>>, vector<16x16x4xf32>
    tpu.vector_store %arg5[%c1, %c0_8, %c0_9], %4 {strides = array<i32>} : memref<18x16x4xf32, #tpu.memory_space<vmem>>, vector<16x16x4xf32>,
    %6 = tpu.iota {dimensions = array<i32: 1>} : vector<1x16x1xi32>
    %c0_i32 = arith.constant 0 : i32
    %c8_i32 = arith.constant 8 : i32
    %7 = arith.muli %c0_i32, %c8_i32 : i32
    %8 = tpu.assume_multiple %7, 8 : i32
    %9 = arith.index_cast %8 : i32 to index
    %c0_10 = arith.constant 0 : index
    %c0_11 = arith.constant 0 : index
    %10 = vector.load %arg5[%9, %c0_10, %c0_11] : memref<18x16x4xf32, #tpu.memory_space<vmem>>, vector<10x16x4xf32>
    %c1_i32 = arith.constant 1 : i32
    %11 = tpu.dynamic_rotate %10 by %c1_i32 dim 1 : vector<10x16x4xf32>, i32 -> vector<10x16x4xf32>
    %c1_i32_12 = arith.constant 1 : i32
    %12 = vector.broadcast %c1_i32_12 : i32 to vector<1x16x1xi32>
    %13 = arith.cmpi slt, %6, %12 : vector<1x16x1xi32>
    %cst_13 = arith.constant 0.000000e+00 : f32
    %14 = vector.shape_cast %13 : vector<1x16x1xi1> to vector<1x16x1xi1>
    %15 = vector.broadcast %14 : vector<1x16x1xi1> to vector<10x16x4xi1>
    %16 = vector.broadcast %cst_13 : f32 to vector<10x16x4xf32>
    %17 = arith.select %15, %16, %11 : vector<10x16x4xi1>, vector<10x16x4xf32>
    %c15_i32 = arith.constant 15 : i32
    %18 = tpu.dynamic_rotate %10 by %c15_i32 dim 1 : vector<10x16x4xf32>, i32 -> vector<10x16x4xf32>
    %c15_i32_14 = arith.constant 15 : i32
    %19 = vector.broadcast %c15_i32_14 : i32 to vector<1x16x1xi32>
    %20 = arith.cmpi sge, %6, %19 : vector<1x16x1xi32>
    %cst_15 = arith.constant 0.000000e+00 : f32
    %21 = vector.shape_cast %20 : vector<1x16x1xi1> to vector<1x16x1xi1>
    %22 = vector.broadcast %21 : vector<1x16x1xi1> to vector<10x16x4xi1>
    %23 = vector.broadcast %cst_15 : f32 to vector<10x16x4xf32>
    %24 = arith.select %22, %23, %18 : vector<10x16x4xi1>, vector<10x16x4xf32>
    %c9 = arith.constant 9 : index
    %c0_16 = arith.constant 0 : index
    %25 = vector.load %arg3[%c9, %c0_16] : memref<10x4xf32, #tpu.memory_space<vmem>>, vector<1x4xf32>
    %26 = vector.shape_cast %25 : vector<1x4xf32> to vector<4xf32>
    %27 = vector.shape_cast %26 : vector<4xf32> to vector<1x1x4xf32>
    %28 = vector.shape_cast %27 : vector<1x1x4xf32> to vector<1x1x4xf32>
    %29 = vector.broadcast %28 : vector<1x1x4xf32> to vector<8x16x4xf32>
    %c0_17 = arith.constant 0 : index
    %c0_18 = arith.constant 0 : index
    %30 = vector.load %arg3[%c0_17, %c0_18] : memref<10x4xf32, #tpu.memory_space<vmem>>, vector<1x4xf32>
    %31 = vector.shape_cast %30 : vector<1x4xf32> to vector<4xf32>
    %32 = vector.extract_strided_slice %17 {offsets = [0, 0, 0], sizes = [8, 16, 4], strides = [1, 1, 1]} : vector<10x16x4xf32> to vector<8x16x4xf32>
    %33 = vector.shape_cast %31 : vector<4xf32> to vector<1x1x4xf32>
    %34 = vector.broadcast %33 : vector<1x1x4xf32> to vector<8x16x4xf32>
    %35 = arith.mulf %34, %32 : vector<8x16x4xf32>
    %36 = arith.addf %29, %35 : vector<8x16x4xf32>
    %c1_19 = arith.constant 1 : index
    %c0_20 = arith.constant 0 : index
    %37 = vector.load %arg3[%c1_19, %c0_20] : memref<10x4xf32, #tpu.memory_space<vmem>>, vector<1x4xf32>
    %38 = vector.shape_cast %37 : vector<1x4xf32> to vector<4xf32>
    %39 = vector.extract_strided_slice %10 {offsets = [0, 0, 0], sizes = [8, 16, 4], strides = [1, 1, 1]} : vector<10x16x4xf32> to vector<8x16x4xf32>
    %40 = vector.shape_cast %38 : vector<4xf32> to vector<1x1x4xf32>
    %41 = vector.broadcast %40 : vector<1x1x4xf32> to vector<8x16x4xf32>
    %42 = arith.mulf %41, %39 : vector<8x16x4xf32>
    %43 = arith.addf %36, %42 : vector<8x16x4xf32>
    %c2 = arith.constant 2 : index
    %c0_21 = arith.constant 0 : index
    %44 = vector.load %arg3[%c2, %c0_21] : memref<10x4xf32, #tpu.memory_space<vmem>>, vector<1x4xf32>
    %45 = vector.shape_cast %44 : vector<1x4xf32> to vector<4xf32>
    %46 = vector.extract_strided_slice %24 {offsets = [0, 0, 0], sizes = [8, 16, 4], strides = [1, 1, 1]} : vector<10x16x4xf32> to vector<8x16x4xf32>
    %47 = vector.shape_cast %45 : vector<4xf32> to vector<1x1x4xf32>
    %48 = vector.broadcast %47 : vector<1x1x4xf32> to vector<8x16x4xf32>
    %49 = arith.mulf %48, %46 : vector<8x16x4xf32>
    %50 = arith.addf %43, %49 : vector<8x16x4xf32>
    %c3 = arith.constant 3 : index
    %c0_22 = arith.constant 0 : index
    %51 = vector.load %arg3[%c3, %c0_22] : memref<10x4xf32, #tpu.memory_space<vmem>>, vector<1x4xf32>
    %52 = vector.shape_cast %51 : vector<1x4xf32> to vector<4xf32>
    %53 = vector.extract_strided_slice %17 {offsets = [1, 0, 0], sizes = [8, 16, 4], strides = [1, 1, 1]} : vector<10x16x4xf32> to vector<8x16x4xf32>
    %54 = vector.shape_cast %52 : vector<4xf32> to vector<1x1x4xf32>
    %55 = vector.broadcast %54 : vector<1x1x4xf32> to vector<8x16x4xf32>
    %56 = arith.mulf %55, %53 : vector<8x16x4xf32>
    %57 = arith.addf %50, %56 : vector<8x16x4xf32>
    %c4 = arith.constant 4 : index
    %c0_23 = arith.constant 0 : index
    %58 = vector.load %arg3[%c4, %c0_23] : memref<10x4xf32, #tpu.memory_space<vmem>>, vector<1x4xf32>
    %59 = vector.shape_cast %58 : vector<1x4xf32> to vector<4xf32>
    %60 = vector.extract_strided_slice %10 {offsets = [1, 0, 0], sizes = [8, 16, 4], strides = [1, 1, 1]} : vector<10x16x4xf32> to vector<8x16x4xf32>
    %61 = vector.shape_cast %59 : vector<4xf32> to vector<1x1x4xf32>
    %62 = vector.broadcast %61 : vector<1x1x4xf32> to vector<8x16x4xf32>
    %63 = arith.mulf %62, %60 : vector<8x16x4xf32>
    %64 = arith.addf %57, %63 : vector<8x16x4xf32>
    %c5 = arith.constant 5 : index
    %c0_24 = arith.constant 0 : index
    %65 = vector.load %arg3[%c5, %c0_24] : memref<10x4xf32, #tpu.memory_space<vmem>>, vector<1x4xf32>
    %66 = vector.shape_cast %65 : vector<1x4xf32> to vector<4xf32>
    %67 = vector.extract_strided_slice %24 {offsets = [1, 0, 0], sizes = [8, 16, 4], strides = [1, 1, 1]} : vector<10x16x4xf32> to vector<8x16x4xf32>
    %68 = vector.shape_cast %66 : vector<4xf32> to vector<1x1x4xf32>
    %69 = vector.broadcast %68 : vector<1x1x4xf32> to vector<8x16x4xf32>
    %70 = arith.mulf %69, %67 : vector<8x16x4xf32>
    %71 = arith.addf %64, %70 : vector<8x16x4xf32>
    %c6 = arith.constant 6 : index
    %c0_25 = arith.constant 0 : index
    %72 = vector.load %arg3[%c6, %c0_25] : memref<10x4xf32, #tpu.memory_space<vmem>>, vector<1x4xf32>
    %73 = vector.shape_cast %72 : vector<1x4xf32> to vector<4xf32>
    %74 = vector.extract_strided_slice %17 {offsets = [2, 0, 0], sizes = [8, 16, 4], strides = [1, 1, 1]} : vector<10x16x4xf32> to vector<8x16x4xf32>
    %75 = vector.shape_cast %73 : vector<4xf32> to vector<1x1x4xf32>
    %76 = vector.broadcast %75 : vector<1x1x4xf32> to vector<8x16x4xf32>
    %77 = arith.mulf %76, %74 : vector<8x16x4xf32>
    %78 = arith.addf %71, %77 : vector<8x16x4xf32>
    %c7 = arith.constant 7 : index
    %c0_26 = arith.constant 0 : index
    %79 = vector.load %arg3[%c7, %c0_26] : memref<10x4xf32, #tpu.memory_space<vmem>>, vector<1x4xf32>
    %80 = vector.shape_cast %79 : vector<1x4xf32> to vector<4xf32>
    %81 = vector.extract_strided_slice %10 {offsets = [2, 0, 0], sizes = [8, 16, 4], strides = [1, 1, 1]} : vector<10x16x4xf32> to vector<8x16x4xf32>
    %82 = vector.shape_cast %80 : vector<4xf32> to vector<1x1x4xf32>
    %83 = vector.broadcast %82 : vector<1x1x4xf32> to vector<8x16x4xf32>
    %84 = arith.mulf %83, %81 : vector<8x16x4xf32>
    %85 = arith.addf %78, %84 : vector<8x16x4xf32>
    %c8 = arith.constant 8 : index
    %c0_27 = arith.constant 0 : index
    %86 = vector.load %arg3[%c8, %c0_27] : memref<10x4xf32, #tpu.memory_space<vmem>>, vector<1x4xf32>
    %87 = vector.shape_cast %86 : vector<1x4xf32> to vector<4xf32>
    %88 = vector.extract_strided_slice %24 {offsets = [2, 0, 0], sizes = [8, 16, 4], strides = [1, 1, 1]} : vector<10x16x4xf32> to vector<8x16x4xf32>
    %89 = vector.shape_cast %87 : vector<4xf32> to vector<1x1x4xf32>
    %90 = vector.broadcast %89 : vector<1x1x4xf32> to vector<8x16x4xf32>
    %91 = arith.mulf %90, %88 : vector<8x16x4xf32>
    %92 = arith.addf %85, %91 : vector<8x16x4xf32>
    %c0_28 = arith.constant 0 : index
    %93 = arith.index_cast %8 : i32 to index
    %c0_29 = arith.constant 0 : index
    %c0_30 = arith.constant 0 : index
    %94 = vector.load %arg4[%c0_28, %93, %c0_29, %c0_30] : memref<1x16x16x4xf32, #tpu.memory_space<vmem>>, vector<1x8x16x4xf32>
    %95 = vector.shape_cast %94 : vector<1x8x16x4xf32> to vector<8x16x4xf32>
    %96 = vector.shape_cast %92 : vector<8x16x4xf32> to vector<1x8x16x4xf32>
    tpu.vector_store %arg4[%c0_28, %93, %c0_29, %c0_30], %96 {strides = array<i32>} : memref<1x16x16x4xf32, #tpu.memory_space<vmem>>, vector<1x8x16x4xf32>,
    %c1_i32_31 = arith.constant 1 : i32
    %c8_i32_32 = arith.constant 8 : i32
    %97 = arith.muli %c1_i32_31, %c8_i32_32 : i32
    %98 = tpu.assume_multiple %97, 8 : i32
    %99 = arith.index_cast %98 : i32 to index
    %c0_33 = arith.constant 0 : index
    %c0_34 = arith.constant 0 : index
    %100 = vector.load %arg5[%99, %c0_33, %c0_34] : memref<18x16x4xf32, #tpu.memory_space<vmem>>, vector<10x16x4xf32>
    %c1_i32_35 = arith.constant 1 : i32
    %101 = tpu.dynamic_rotate %100 by %c1_i32_35 dim 1 : vector<10x16x4xf32>, i32 -> vector<10x16x4xf32>
    %c1_i32_36 = arith.constant 1 : i32
    %102 = vector.broadcast %c1_i32_36 : i32 to vector<1x16x1xi32>
    %103 = arith.cmpi slt, %6, %102 : vector<1x16x1xi32>
    %cst_37 = arith.constant 0.000000e+00 : f32
    %104 = vector.shape_cast %103 : vector<1x16x1xi1> to vector<1x16x1xi1>
    %105 = vector.broadcast %104 : vector<1x16x1xi1> to vector<10x16x4xi1>
    %106 = vector.broadcast %cst_37 : f32 to vector<10x16x4xf32>
    %107 = arith.select %105, %106, %101 : vector<10x16x4xi1>, vector<10x16x4xf32>
    %c15_i32_38 = arith.constant 15 : i32
    %108 = tpu.dynamic_rotate %100 by %c15_i32_38 dim 1 : vector<10x16x4xf32>, i32 -> vector<10x16x4xf32>
    %c15_i32_39 = arith.constant 15 : i32
    %109 = vector.broadcast %c15_i32_39 : i32 to vector<1x16x1xi32>
    %110 = arith.cmpi sge, %6, %109 : vector<1x16x1xi32>
    %cst_40 = arith.constant 0.000000e+00 : f32
    %111 = vector.shape_cast %110 : vector<1x16x1xi1> to vector<1x16x1xi1>
    %112 = vector.broadcast %111 : vector<1x16x1xi1> to vector<10x16x4xi1>
    %113 = vector.broadcast %cst_40 : f32 to vector<10x16x4xf32>
    %114 = arith.select %112, %113, %108 : vector<10x16x4xi1>, vector<10x16x4xf32>
    %c9_41 = arith.constant 9 : index
    %c0_42 = arith.constant 0 : index
    %115 = vector.load %arg3[%c9_41, %c0_42] : memref<10x4xf32, #tpu.memory_space<vmem>>, vector<1x4xf32>
    %116 = vector.shape_cast %115 : vector<1x4xf32> to vector<4xf32>
    %117 = vector.shape_cast %116 : vector<4xf32> to vector<1x1x4xf32>
    %118 = vector.shape_cast %117 : vector<1x1x4xf32> to vector<1x1x4xf32>
    %119 = vector.broadcast %118 : vector<1x1x4xf32> to vector<8x16x4xf32>
    %c0_43 = arith.constant 0 : index
    %c0_44 = arith.constant 0 : index
    %120 = vector.load %arg3[%c0_43, %c0_44] : memref<10x4xf32, #tpu.memory_space<vmem>>, vector<1x4xf32>
    %121 = vector.shape_cast %120 : vector<1x4xf32> to vector<4xf32>
    %122 = vector.extract_strided_slice %107 {offsets = [0, 0, 0], sizes = [8, 16, 4], strides = [1, 1, 1]} : vector<10x16x4xf32> to vector<8x16x4xf32>
    %123 = vector.shape_cast %121 : vector<4xf32> to vector<1x1x4xf32>
    %124 = vector.broadcast %123 : vector<1x1x4xf32> to vector<8x16x4xf32>
    %125 = arith.mulf %124, %122 : vector<8x16x4xf32>
    %126 = arith.addf %119, %125 : vector<8x16x4xf32>
    %c1_45 = arith.constant 1 : index
    %c0_46 = arith.constant 0 : index
    %127 = vector.load %arg3[%c1_45, %c0_46] : memref<10x4xf32, #tpu.memory_space<vmem>>, vector<1x4xf32>
    %128 = vector.shape_cast %127 : vector<1x4xf32> to vector<4xf32>
    %129 = vector.extract_strided_slice %100 {offsets = [0, 0, 0], sizes = [8, 16, 4], strides = [1, 1, 1]} : vector<10x16x4xf32> to vector<8x16x4xf32>
    %130 = vector.shape_cast %128 : vector<4xf32> to vector<1x1x4xf32>
    %131 = vector.broadcast %130 : vector<1x1x4xf32> to vector<8x16x4xf32>
    %132 = arith.mulf %131, %129 : vector<8x16x4xf32>
    %133 = arith.addf %126, %132 : vector<8x16x4xf32>
    %c2_47 = arith.constant 2 : index
    %c0_48 = arith.constant 0 : index
    %134 = vector.load %arg3[%c2_47, %c0_48] : memref<10x4xf32, #tpu.memory_space<vmem>>, vector<1x4xf32>
    %135 = vector.shape_cast %134 : vector<1x4xf32> to vector<4xf32>
    %136 = vector.extract_strided_slice %114 {offsets = [0, 0, 0], sizes = [8, 16, 4], strides = [1, 1, 1]} : vector<10x16x4xf32> to vector<8x16x4xf32>
    %137 = vector.shape_cast %135 : vector<4xf32> to vector<1x1x4xf32>
    %138 = vector.broadcast %137 : vector<1x1x4xf32> to vector<8x16x4xf32>
    %139 = arith.mulf %138, %136 : vector<8x16x4xf32>
    %140 = arith.addf %133, %139 : vector<8x16x4xf32>
    %c3_49 = arith.constant 3 : index
    %c0_50 = arith.constant 0 : index
    %141 = vector.load %arg3[%c3_49, %c0_50] : memref<10x4xf32, #tpu.memory_space<vmem>>, vector<1x4xf32>
    %142 = vector.shape_cast %141 : vector<1x4xf32> to vector<4xf32>
    %143 = vector.extract_strided_slice %107 {offsets = [1, 0, 0], sizes = [8, 16, 4], strides = [1, 1, 1]} : vector<10x16x4xf32> to vector<8x16x4xf32>
    %144 = vector.shape_cast %142 : vector<4xf32> to vector<1x1x4xf32>
    %145 = vector.broadcast %144 : vector<1x1x4xf32> to vector<8x16x4xf32>
    %146 = arith.mulf %145, %143 : vector<8x16x4xf32>
    %147 = arith.addf %140, %146 : vector<8x16x4xf32>
    %c4_51 = arith.constant 4 : index
    %c0_52 = arith.constant 0 : index
    %148 = vector.load %arg3[%c4_51, %c0_52] : memref<10x4xf32, #tpu.memory_space<vmem>>, vector<1x4xf32>
    %149 = vector.shape_cast %148 : vector<1x4xf32> to vector<4xf32>
    %150 = vector.extract_strided_slice %100 {offsets = [1, 0, 0], sizes = [8, 16, 4], strides = [1, 1, 1]} : vector<10x16x4xf32> to vector<8x16x4xf32>
    %151 = vector.shape_cast %149 : vector<4xf32> to vector<1x1x4xf32>
    %152 = vector.broadcast %151 : vector<1x1x4xf32> to vector<8x16x4xf32>
    %153 = arith.mulf %152, %150 : vector<8x16x4xf32>
    %154 = arith.addf %147, %153 : vector<8x16x4xf32>
    %c5_53 = arith.constant 5 : index
    %c0_54 = arith.constant 0 : index
    %155 = vector.load %arg3[%c5_53, %c0_54] : memref<10x4xf32, #tpu.memory_space<vmem>>, vector<1x4xf32>
    %156 = vector.shape_cast %155 : vector<1x4xf32> to vector<4xf32>
    %157 = vector.extract_strided_slice %114 {offsets = [1, 0, 0], sizes = [8, 16, 4], strides = [1, 1, 1]} : vector<10x16x4xf32> to vector<8x16x4xf32>
    %158 = vector.shape_cast %156 : vector<4xf32> to vector<1x1x4xf32>
    %159 = vector.broadcast %158 : vector<1x1x4xf32> to vector<8x16x4xf32>
    %160 = arith.mulf %159, %157 : vector<8x16x4xf32>
    %161 = arith.addf %154, %160 : vector<8x16x4xf32>
    %c6_55 = arith.constant 6 : index
    %c0_56 = arith.constant 0 : index
    %162 = vector.load %arg3[%c6_55, %c0_56] : memref<10x4xf32, #tpu.memory_space<vmem>>, vector<1x4xf32>
    %163 = vector.shape_cast %162 : vector<1x4xf32> to vector<4xf32>
    %164 = vector.extract_strided_slice %107 {offsets = [2, 0, 0], sizes = [8, 16, 4], strides = [1, 1, 1]} : vector<10x16x4xf32> to vector<8x16x4xf32>
    %165 = vector.shape_cast %163 : vector<4xf32> to vector<1x1x4xf32>
    %166 = vector.broadcast %165 : vector<1x1x4xf32> to vector<8x16x4xf32>
    %167 = arith.mulf %166, %164 : vector<8x16x4xf32>
    %168 = arith.addf %161, %167 : vector<8x16x4xf32>
    %c7_57 = arith.constant 7 : index
    %c0_58 = arith.constant 0 : index
    %169 = vector.load %arg3[%c7_57, %c0_58] : memref<10x4xf32, #tpu.memory_space<vmem>>, vector<1x4xf32>
    %170 = vector.shape_cast %169 : vector<1x4xf32> to vector<4xf32>
    %171 = vector.extract_strided_slice %100 {offsets = [2, 0, 0], sizes = [8, 16, 4], strides = [1, 1, 1]} : vector<10x16x4xf32> to vector<8x16x4xf32>
    %172 = vector.shape_cast %170 : vector<4xf32> to vector<1x1x4xf32>
    %173 = vector.broadcast %172 : vector<1x1x4xf32> to vector<8x16x4xf32>
    %174 = arith.mulf %173, %171 : vector<8x16x4xf32>
    %175 = arith.addf %168, %174 : vector<8x16x4xf32>
    %c8_59 = arith.constant 8 : index
    %c0_60 = arith.constant 0 : index
    %176 = vector.load %arg3[%c8_59, %c0_60] : memref<10x4xf32, #tpu.memory_space<vmem>>, vector<1x4xf32>
    %177 = vector.shape_cast %176 : vector<1x4xf32> to vector<4xf32>
    %178 = vector.extract_strided_slice %114 {offsets = [2, 0, 0], sizes = [8, 16, 4], strides = [1, 1, 1]} : vector<10x16x4xf32> to vector<8x16x4xf32>
    %179 = vector.shape_cast %177 : vector<4xf32> to vector<1x1x4xf32>
    %180 = vector.broadcast %179 : vector<1x1x4xf32> to vector<8x16x4xf32>
    %181 = arith.mulf %180, %178 : vector<8x16x4xf32>
    %182 = arith.addf %175, %181 : vector<8x16x4xf32>
    %c0_61 = arith.constant 0 : index
    %183 = arith.index_cast %98 : i32 to index
    %c0_62 = arith.constant 0 : index
    %c0_63 = arith.constant 0 : index
    %184 = vector.load %arg4[%c0_61, %183, %c0_62, %c0_63] : memref<1x16x16x4xf32, #tpu.memory_space<vmem>>, vector<1x8x16x4xf32>
    %185 = vector.shape_cast %184 : vector<1x8x16x4xf32> to vector<8x16x4xf32>
    %186 = vector.shape_cast %182 : vector<8x16x4xf32> to vector<1x8x16x4xf32>
    tpu.vector_store %arg4[%c0_61, %183, %c0_62, %c0_63], %186 {strides = array<i32>} : memref<1x16x16x4xf32, #tpu.memory_space<vmem>>, vector<1x8x16x4xf32>,
    %c2_i32 = arith.constant 2 : i32
    return
  }
  func.func @transform_0(%arg0: i32, %arg1: i32) -> (i32, i32, i32, i32) {
    %c0_i32 = arith.constant 0 : i32
    %c0_i32_0 = arith.constant 0 : i32
    %c0_i32_1 = arith.constant 0 : i32
    return %arg0, %c0_i32, %c0_i32_0, %arg1 : i32, i32, i32, i32
  }
  func.func @transform_1(%arg0: i32, %arg1: i32) -> (i32, i32) {
    %c0_i32 = arith.constant 0 : i32
    %c0_i32_0 = arith.constant 0 : i32
    return %c0_i32, %arg1 : i32, i32
  }
  func.func @transform_2(%arg0: i32, %arg1: i32) -> (i32, i32, i32, i32) {
    %c0_i32 = arith.constant 0 : i32
    %c0_i32_0 = arith.constant 0 : i32
    %c0_i32_1 = arith.constant 0 : i32
    return %arg0, %c0_i32, %c0_i32_0, %arg1 : i32, i32, i32, i32
  }
}

</mosaic_0001>

<llo_original>
// kernel: tpu_custom_call.1
$region0: #{tpu_custom_call.1}
  #allocation0 [shape = 'u32[]', space=smem, size = 0x4, offset = 0x4, fixed_abs, tag = 'smem constant byte address 0x4 - core index']
  #allocation1 [shape = 'u32[144,128]{1,0:T(1,128)}', space=vmem, size = 0x12000, scoped, tag = 'internal scratch']
  #allocation2 [shape = 'f32[18,16,4]{2,1,0:T(8,128)}', space=vmem, size = 0x24000, scoped, tag = 'scratch operand']
  %s0 = inlined_call_operand.vmem [shape: f32[2,16,16,4], index: 0, kind: input, shape index: {}]
  %s1 = inlined_call_operand.vmem [shape: f32[10,4], index: 1, kind: input, shape index: {}]
  %s2 = inlined_call_operand.vmem [shape: f32[2,16,16,4], index: 2, kind: output, shape index: {}]
  %s3 = sld [smem:[#allocation0]]
  $region41: #{tpu_custom_call.1} parent=0
    _
  %s5 = ssub.s32 1, %s3
  %s6 = scalar_select 0, %s5, %s3
  loop: start=0, step=1, limit=4
  $region2: #{tpu_custom_call.1} parent=0 // loop_pre_header
    _
  $region3: #{tpu_custom_call.1} parent=0 // loop_header
    %s8 = sphi 0, %s12
    %p9 = scmp.ge.s32.totalorder %s8, 4
    %s15 = sphi 0, %s27
    %s16 = sphi 0, %s23
    %s17 = sphi 0, %s15
    %s18 = sphi 0, %s16
    %s19 = sphi 0, %s17
    %s20 = sphi 0, %s18
    %s32 = sphi 0, %s34
    %s35 = sphi 0, %s32
    %s36 = sphi 0, %s35
    %s52 = sphi 0, %s36
    %s58 = sphi 0, %s60
    %s61 = sphi 0, %s58
    %s62 = sphi 0, %s61
    %s78 = sphi 0, %s62
    %s86 = sphi 0, %s88
    %s89 = sphi 0, %s86
    %s90 = sphi 0, %s89
    %s106 = sphi 0, %s90
  $region4: #{tpu_custom_call.1} parent=0 // loop_header_branch
    %11 = sbr.rel (%p9) target = $region8
  $region5: #{tpu_custom_call.1} parent=0 // loop_body
    %s13 = ssub.s32 %s8, 1
    %s14 = ssub.s32 %s8, 2
    %s21 = sadd.s32 1, %s16
    %p22 = scmp.ge.s32.totalorder %s21, 1
    %s23 = scalar_select %p22, 0, %s21
    %s24 = sadd.s32 1, %s15
    %s25 = scalar_select %p22, %s24, %s15
    %p26 = scmp.ge.s32.totalorder %s25, 2
    %s27 = scalar_select %p26, 0, %s25
    %s28 = ssub.s32 %s15, %s27
    %s29 = ssub.s32 %s16, %s23
    %s30 = sor.u32 %s28, %s29
    %p31 = scmp.eq.s32.totalorder %s30, 0
    %s33 = sadd.s32 %s32, 1
    %s34 = scalar_select %p31, %s32, %s33
    %p37 = pneg %p31
    %p38 = scmp.eq.s32.totalorder %s8, 1
    %p39 = por %p37, %p38
    %p40 = scmp.ne.s32.totalorder %s32, %s35
    %p41 = scmp.eq.s32.totalorder %s8, 0
    %p42 = por %p40, %p41
    %p43 = scmp.ne.s32.totalorder %s32, %s35
    %p44 = scmp.eq.s32.totalorder %s13, 1
    %p45 = por %p43, %p44
    %p46 = scmp.ne.s32.totalorder %s35, %s36
    %p47 = scmp.eq.s32.totalorder %s13, 0
    %p48 = por %p46, %p47
    %p49 = scmp.ne.s32.totalorder %s35, %s36
    %p50 = scmp.eq.s32.totalorder %s14, 1
    %p51 = por %p49, %p50
    %p53 = scmp.ne.s32.totalorder %s36, %s52
    %p54 = scmp.eq.s32.totalorder %s14, 0
    %p55 = por %p53, %p54
    %s56 = ssub.s32 %s16, %s23
    %p57 = scmp.eq.s32.totalorder %s56, 0
    %s59 = sadd.s32 %s58, 1
    %s60 = scalar_select %p57, %s58, %s59
    %p63 = pneg %p57
    %p64 = scmp.eq.s32.totalorder %s8, 1
    %p65 = por %p63, %p64
    %p66 = scmp.ne.s32.totalorder %s58, %s61
    %p67 = scmp.eq.s32.totalorder %s8, 0
    %p68 = por %p66, %p67
    %p69 = scmp.ne.s32.totalorder %s58, %s61
    %p70 = scmp.eq.s32.totalorder %s13, 1
    %p71 = por %p69, %p70
    %p72 = scmp.ne.s32.totalorder %s61, %s62
    %p73 = scmp.eq.s32.totalorder %s13, 0
    %p74 = por %p72, %p73
    %p75 = scmp.ne.s32.totalorder %s61, %s62
    %p76 = scmp.eq.s32.totalorder %s14, 1
    %p77 = por %p75, %p76
    %p79 = scmp.ne.s32.totalorder %s62, %s78
    %p80 = scmp.eq.s32.totalorder %s14, 0
    %p81 = por %p79, %p80
    %s82 = ssub.s32 %s15, %s27
    %s83 = ssub.s32 %s16, %s23
    %s84 = sor.u32 %s82, %s83
    %p85 = scmp.eq.s32.totalorder %s84, 0
    %s87 = sadd.s32 %s86, 1
    %s88 = scalar_select %p85, %s86, %s87
    %p91 = pneg %p85
    %p92 = scmp.eq.s32.totalorder %s8, 1
    %p93 = por %p91, %p92
    %p94 = scmp.ne.s32.totalorder %s86, %s89
    %p95 = scmp.eq.s32.totalorder %s8, 0
    %p96 = por %p94, %p95
    %p97 = scmp.ne.s32.totalorder %s86, %s89
    %p98 = scmp.eq.s32.totalorder %s13, 1
    %p99 = por %p97, %p98
    %p100 = scmp.ne.s32.totalorder %s89, %s90
    %p101 = scmp.eq.s32.totalorder %s13, 0
    %p102 = por %p100, %p101
    %p103 = scmp.ne.s32.totalorder %s89, %s90
    %p104 = scmp.eq.s32.totalorder %s14, 1
    %p105 = por %p103, %p104
    %p107 = scmp.ne.s32.totalorder %s90, %s106
    %p108 = scmp.eq.s32.totalorder %s14, 0
    %p109 = por %p107, %p108
    %p110 = scmp.le.s32.totalorder 1, %s8
    %p111 = scmp.lt.s32.totalorder %s8, 3
    %p112 = pnand %p110, %p111
    %p113 = pneg %p112
    // Predicated region
    $region9: #{tpu_custom_call.1} parent=5 // pred_check
      _
    $region10: #{tpu_custom_call.1} parent=5 // pred_check_branch
      %115 = sbr.rel (%p112) target = $region12
    $region11: #{tpu_custom_call.1} parent=5 // pred_region
      %s116 = ssub.s32 %s8, 1
      // Predicated region
      $region13: #{tpu_custom_call.1} parent=11 // pred_check
        %p117 = pneg %p74
      $region14: #{tpu_custom_call.1} parent=11 // pred_check_branch
        %119 = sbr.rel (%p117) target = $region16
      $region15: #{tpu_custom_call.1} parent=11 // pred_region
        %p120 = scmp.lt.s32.totalorder %s18, 0
        %s121 = scalar_select %p120, %s18, 0
        %s122 = smul.addr %s121, 8
        %s123 = scalar_lea.vmem %s1, %s122
      $region16: #{tpu_custom_call.1} parent=11 // pred_fallthru
        _
    $region12: #{tpu_custom_call.1} parent=5 // pred_fallthru
      _
    %p124 = scmp.lt.s32.totalorder %s8, 2
    // Predicated region
    $region17: #{tpu_custom_call.1} parent=5 // pred_check
      %p125 = pneg %p124
    $region18: #{tpu_custom_call.1} parent=5 // pred_check_branch
      %127 = sbr.rel (%p125) target = $region20
    $region19: #{tpu_custom_call.1} parent=5 // pred_region
      // Predicated region
      $region21: #{tpu_custom_call.1} parent=19 // pred_check
        %p128 = pneg %p42
      $region22: #{tpu_custom_call.1} parent=19 // pred_check_branch
        %130 = sbr.rel (%p128) target = $region24
      $region23: #{tpu_custom_call.1} parent=19 // pred_region
        %p131 = scmp.lt.s32.totalorder %s15, 1
        %s132 = scalar_select %p131, %s15, 1
        %p133 = scmp.lt.s32.totalorder %s16, 0
        %s134 = scalar_select %p133, %s16, 0
        %s135 = smul.addr %s132, 32
        %s136 = sadd.s32 %s134, %s135
        %s137 = smul.addr %s136, 8
        %s138 = scalar_lea.vmem %s0, %s137
      $region24: #{tpu_custom_call.1} parent=19 // pred_fallthru
        _
    $region20: #{tpu_custom_call.1} parent=5 // pred_fallthru
      _
    %p139 = scmp.le.s32.totalorder 1, %s8
    %p140 = scmp.lt.s32.totalorder %s8, 3
    %p141 = pnand %p139, %p140
    %p142 = pneg %p141
    // Predicated region
    $region25: #{tpu_custom_call.1} parent=5 // pred_check
      _
    $region26: #{tpu_custom_call.1} parent=5 // pred_check_branch
      %144 = sbr.rel (%p141) target = $region28
    $region27: #{tpu_custom_call.1} parent=5 // pred_region
      %s145 = ssub.s32 %s8, 1
      %p146 = scmp.lt.s32.totalorder %s17, 1
      %s147 = scalar_select %p146, %s17, 1
      %p148 = scmp.lt.s32.totalorder %s18, 0
      %s149 = scalar_select %p148, %s18, 0
      %s150 = smul.addr %s147, 32
      %s151 = sadd.s32 %s149, %s150
      %s152 = smul.addr %s151, 8
      %s153 = scalar_lea.vmem %s0, %s152
      %p154 = pneg %p48
      %p155 = pneg %p45
      %p156 = scmp.lt.s32.totalorder %s18, 0
      %s157 = scalar_select %p156, %s18, 0
      %s158 = smul.addr %s157, 8
      %s159 = scalar_lea.vmem %s1, %s158
      %p160 = pneg %p74
      %p161 = pneg %p71
      %p162 = pneg %p102
      %p163 = pneg %p99
      %p164 = scmp.lt.s32.totalorder %s17, 1
      %s165 = scalar_select %p164, %s17, 1
      %p166 = scmp.lt.s32.totalorder %s18, 0
      %s167 = scalar_select %p166, %s18, 0
      %s168 = smul.addr %s165, 32
      %s169 = sadd.s32 %s167, %s168
      %s170 = smul.addr %s169, 8
      %s171 = scalar_lea.vmem %s2, %s170
      %p172 = scmp.lt.s32.totalorder %s17, 1
      %s173 = scalar_select %p172, %s17, 1
      %p174 = scmp.lt.s32.totalorder %s18, 0
      %s175 = scalar_select %p174, %s18, 0
      %s176 = smul.addr %s173, 32
      %s177 = sadd.s32 %s175, %s176
      %s178 = smul.addr %s177, 8
      %s179 = scalar_lea.vmem %s0, %s178
      %p180 = scmp.lt.s32.totalorder %s18, 0
      %s181 = scalar_select %p180, %s18, 0
      %s182 = smul.addr %s181, 8
      %s183 = scalar_lea.vmem %s1, %s182
      %p184 = scmp.lt.s32.totalorder %s17, 1
      %s185 = scalar_select %p184, %s17, 1
      %p186 = scmp.lt.s32.totalorder %s18, 0
      %s187 = scalar_select %p186, %s18, 0
      %s188 = smul.addr %s185, 32
      %s189 = sadd.s32 %s187, %s188
      %s190 = smul.addr %s189, 8
      %s191 = scalar_lea.vmem %s2, %s190
      %vm192 = vcmask 31744
      %193 = vst.msk [vmem:[#allocation2] sm:$0xff] %vm192, 0.0
      %194 = vst.msk [vmem:[#allocation2 + $0x8] sm:$0xff] %vm192, 0.0
      %s195 = scalar_lea.vmem [#allocation2], 272
      %196 = vst.msk [vmem:[%s195] sm:$0xff] %vm192, 0.0
      %197 = vst.msk [vmem:[%s195 + $0x8] sm:$0xff] %vm192, 0.0
      %v198 = vld [vmem:[%s179] sm:$0xff]
      %v199 = vld [vmem:[%s179 + $0x8] sm:$0xff]
      %v200 = vld [vmem:[%s179 + $0x10] sm:$0xff]
      %v201 = vld [vmem:[%s179 + $0x18] sm:$0xff]
      %v202 = vld [vmem:[%s179 + $0x20] sm:$0xff]
      %v203 = vld [vmem:[%s179 + $0x28] sm:$0xff]
      %v204 = vld [vmem:[%s179 + $0x30] sm:$0xff]
      %v205 = vld [vmem:[%s179 + $0x38] sm:$0xff]
      %v206 = vld [vmem:[%s179 + $0x40] sm:$0xff]
      %v207 = vld [vmem:[%s179 + $0x48] sm:$0xff]
      %v208 = vld [vmem:[%s179 + $0x50] sm:$0xff]
      %v209 = vld [vmem:[%s179 + $0x58] sm:$0xff]
      %v210 = vld [vmem:[%s179 + $0x60] sm:$0xff]
      %v211 = vld [vmem:[%s179 + $0x68] sm:$0xff]
      %v212 = vld [vmem:[%s179 + $0x70] sm:$0xff]
      %v213 = vld [vmem:[%s179 + $0x78] sm:$0xff]
      %v214 = vld [vmem:[%s179 + $0x80] sm:$0xff]
      %v215 = vld [vmem:[%s179 + $0x88] sm:$0xff]
      %v216 = vld [vmem:[%s179 + $0x90] sm:$0xff]
      %v217 = vld [vmem:[%s179 + $0x98] sm:$0xff]
      %v218 = vld [vmem:[%s179 + $0xa0] sm:$0xff]
      %v219 = vld [vmem:[%s179 + $0xa8] sm:$0xff]
      %v220 = vld [vmem:[%s179 + $0xb0] sm:$0xff]
      %v221 = vld [vmem:[%s179 + $0xb8] sm:$0xff]
      %v222 = vld [vmem:[%s179 + $0xc0] sm:$0xff]
      %v223 = vld [vmem:[%s179 + $0xc8] sm:$0xff]
      %v224 = vld [vmem:[%s179 + $0xd0] sm:$0xff]
      %v225 = vld [vmem:[%s179 + $0xd8] sm:$0xff]
      %v226 = vld [vmem:[%s179 + $0xe0] sm:$0xff]
      %v227 = vld [vmem:[%s179 + $0xe8] sm:$0xff]
      %v228 = vld [vmem:[%s179 + $0xf0] sm:$0xff]
      %v229 = vld [vmem:[%s179 + $0xf8] sm:$0xff]
      %s230 = scalar_lea.vmem [#allocation2], 16
      %231 = vst.msk [vmem:[%s230] sm:$0xff] %vm192, %v198
      %232 = vst.msk [vmem:[%s230 + $0x8] sm:$0xff] %vm192, %v199
      %233 = vst.msk [vmem:[%s230 + $0x10] sm:$0xff] %vm192, %v200
      %234 = vst.msk [vmem:[%s230 + $0x18] sm:$0xff] %vm192, %v201
      %235 = vst.msk [vmem:[%s230 + $0x20] sm:$0xff] %vm192, %v202
      %236 = vst.msk [vmem:[%s230 + $0x28] sm:$0xff] %vm192, %v203
      %237 = vst.msk [vmem:[%s230 + $0x30] sm:$0xff] %vm192, %v204
      %238 = vst.msk [vmem:[%s230 + $0x38] sm:$0xff] %vm192, %v205
      %239 = vst.msk [vmem:[%s230 + $0x40] sm:$0xff] %vm192, %v206
      %240 = vst.msk [vmem:[%s230 + $0x48] sm:$0xff] %vm192, %v207
      %241 = vst.msk [vmem:[%s230 + $0x50] sm:$0xff] %vm192, %v208
      %242 = vst.msk [vmem:[%s230 + $0x58] sm:$0xff] %vm192, %v209
      %243 = vst.msk [vmem:[%s230 + $0x60] sm:$0xff] %vm192, %v210
      %244 = vst.msk [vmem:[%s230 + $0x68] sm:$0xff] %vm192, %v211
      %245 = vst.msk [vmem:[%s230 + $0x70] sm:$0xff] %vm192, %v212
      %246 = vst.msk [vmem:[%s230 + $0x78] sm:$0xff] %vm192, %v213
      %247 = vst.msk [vmem:[%s230 + $0x80] sm:$0xff] %vm192, %v214
      %248 = vst.msk [vmem:[%s230 + $0x88] sm:$0xff] %vm192, %v215
      %249 = vst.msk [vmem:[%s230 + $0x90] sm:$0xff] %vm192, %v216
      %250 = vst.msk [vmem:[%s230 + $0x98] sm:$0xff] %vm192, %v217
      %251 = vst.msk [vmem:[%s230 + $0xa0] sm:$0xff] %vm192, %v218
      %252 = vst.msk [vmem:[%s230 + $0xa8] sm:$0xff] %vm192, %v219
      %253 = vst.msk [vmem:[%s230 + $0xb0] sm:$0xff] %vm192, %v220
      %254 = vst.msk [vmem:[%s230 + $0xb8] sm:$0xff] %vm192, %v221
      %255 = vst.msk [vmem:[%s230 + $0xc0] sm:$0xff] %vm192, %v222
      %256 = vst.msk [vmem:[%s230 + $0xc8] sm:$0xff] %vm192, %v223
      %257 = vst.msk [vmem:[%s230 + $0xd0] sm:$0xff] %vm192, %v224
      %258 = vst.msk [vmem:[%s230 + $0xd8] sm:$0xff] %vm192, %v225
      %259 = vst.msk [vmem:[%s230 + $0xe0] sm:$0xff] %vm192, %v226
      %260 = vst.msk [vmem:[%s230 + $0xe8] sm:$0xff] %vm192, %v227
      %261 = vst.msk [vmem:[%s230 + $0xf0] sm:$0xff] %vm192, %v228
      %262 = vst.msk [vmem:[%s230 + $0xf8] sm:$0xff] %vm192, %v229
      %v263 = vlaneseq
      %v264 = vshrl.u32 %v263, 7
      %v265 = vadd.s32 %v264, 8
      %s266 = smul.u32 0, 16
      %s267 = scalar_lea.vmem [#allocation2], %s266
      %v268 = vld [vmem:[%s267] sm:$0xff]
      %v269 = vld [vmem:[%s267 + $0x8] sm:$0xff]
      %v270 = vld [vmem:[%s267 + $0x10] sm:$0xff]
      %v271 = vld [vmem:[%s267 + $0x18] sm:$0xff]
      %v272 = vld [vmem:[%s267 + $0x20] sm:$0xff]
      %v273 = vld [vmem:[%s267 + $0x28] sm:$0xff]
      %v274 = vld [vmem:[%s267 + $0x30] sm:$0xff]
      %v275 = vld [vmem:[%s267 + $0x38] sm:$0xff]
      %v276 = vld [vmem:[%s267 + $0x40] sm:$0xff]
      %v277 = vld [vmem:[%s267 + $0x48] sm:$0xff]
      %v278 = vld [vmem:[%s267 + $0x50] sm:$0xff]
      %v279 = vld [vmem:[%s267 + $0x58] sm:$0xff]
      %v280 = vld [vmem:[%s267 + $0x60] sm:$0xff]
      %v281 = vld [vmem:[%s267 + $0x68] sm:$0xff]
      %v282 = vld [vmem:[%s267 + $0x70] sm:$0xff]
      %v283 = vld [vmem:[%s267 + $0x78] sm:$0xff]
      %v284 = vld [vmem:[%s267 + $0x80] sm:$0xff]
      %v285 = vld [vmem:[%s267 + $0x88] sm:$0xff]
      %v286 = vld [vmem:[%s267 + $0x90] sm:$0xff]
      %v287 = vld [vmem:[%s267 + $0x98] sm:$0xff]
      %v288 = vrot.slane %v268, 7
      %v289 = vrot.slane %v270, 7
      %v290 = vrot.slane %v272, 7
      %v291 = vrot.slane %v274, 7
      %v292 = vrot.slane %v276, 7
      %v293 = vrot.slane %v278, 7
      %v294 = vrot.slane %v280, 7
      %v295 = vrot.slane %v282, 7
      %v296 = vrot.slane %v284, 7
      %v297 = vrot.slane %v286, 7
      %v298 = vrot.slane %v269, 7
      %v299 = vrot.slane %v271, 7
      %v300 = vrot.slane %v273, 7
      %v301 = vrot.slane %v275, 7
      %v302 = vrot.slane %v277, 7
      %v303 = vrot.slane %v279, 7
      %v304 = vrot.slane %v281, 7
      %v305 = vrot.slane %v283, 7
      %v306 = vrot.slane %v285, 7
      %v307 = vrot.slane %v287, 7
      %vm308 = vcmp.lt.s32.totalorder %v264, 1
      %v309 = vsel %vm308, %v288, %v298
      %v310 = vsel %vm308, %v289, %v299
      %v311 = vsel %vm308, %v290, %v300
      %v312 = vsel %vm308, %v291, %v301
      %v313 = vsel %vm308, %v292, %v302
      %v314 = vsel %vm308, %v293, %v303
      %v315 = vsel %vm308, %v294, %v304
      %v316 = vsel %vm308, %v295, %v305
      %v317 = vsel %vm308, %v296, %v306
      %v318 = vsel %vm308, %v297, %v307
      %v319 = vsel %vm308, %v298, %v288
      %v320 = vsel %vm308, %v299, %v289
      %v321 = vsel %vm308, %v300, %v290
      %v322 = vsel %vm308, %v301, %v291
      %v323 = vsel %vm308, %v302, %v292
      %v324 = vsel %vm308, %v303, %v293
      %v325 = vsel %vm308, %v304, %v294
      %v326 = vsel %vm308, %v305, %v295
      %v327 = vsel %vm308, %v306, %v296
      %v328 = vsel %vm308, %v307, %v297
      %vm329 = vcmp.lt.s32.totalorder %v265, 1
      %v330 = vsel %vm308, 1, 0
      %v331 = vsel %vm329, 1, 0
      %vm332 = vcmp.eq.s32.totalorder %v330, 1
      %vm333 = vcmp.eq.s32.totalorder %v331, 1
      %v334 = vsel %vm332, 0.0, %v319
      %v335 = vsel %vm333, 0.0, %v309
      %v336 = vsel %vm332, 0.0, %v320
      %v337 = vsel %vm333, 0.0, %v310
      %v338 = vsel %vm332, 0.0, %v321
      %v339 = vsel %vm333, 0.0, %v311
      %v340 = vsel %vm332, 0.0, %v322
      %v341 = vsel %vm333, 0.0, %v312
      %v342 = vsel %vm332, 0.0, %v323
      %v343 = vsel %vm333, 0.0, %v313
      %v344 = vsel %vm332, 0.0, %v324
      %v345 = vsel %vm333, 0.0, %v314
      %v346 = vsel %vm332, 0.0, %v325
      %v347 = vsel %vm333, 0.0, %v315
      %v348 = vsel %vm332, 0.0, %v326
      %v349 = vsel %vm333, 0.0, %v316
      %v350 = vsel %vm332, 0.0, %v327
      %v351 = vsel %vm333, 0.0, %v317
      %v352 = vsel %vm332, 0.0, %v328
      %v353 = vsel %vm333, 0.0, %v318
      %v354 = vrot.slane %v268, 1
      %v355 = vrot.slane %v270, 1
      %v356 = vrot.slane %v272, 1
      %v357 = vrot.slane %v274, 1
      %v358 = vrot.slane %v276, 1
      %v359 = vrot.slane %v278, 1
      %v360 = vrot.slane %v280, 1
      %v361 = vrot.slane %v282, 1
      %v362 = vrot.slane %v284, 1
      %v363 = vrot.slane %v286, 1
      %v364 = vrot.slane %v269, 1
      %v365 = vrot.slane %v271, 1
      %v366 = vrot.slane %v273, 1
      %v367 = vrot.slane %v275, 1
      %v368 = vrot.slane %v277, 1
      %v369 = vrot.slane %v279, 1
      %v370 = vrot.slane %v281, 1
      %v371 = vrot.slane %v283, 1
      %v372 = vrot.slane %v285, 1
      %v373 = vrot.slane %v287, 1
      %vm374 = vcmp.lt.s32.totalorder %v264, 7
      %v375 = vsel %vm374, %v354, %v364
      %v376 = vsel %vm374, %v355, %v365
      %v377 = vsel %vm374, %v356, %v366
      %v378 = vsel %vm374, %v357, %v367
      %v379 = vsel %vm374, %v358, %v368
      %v380 = vsel %vm374, %v359, %v369
      %v381 = vsel %vm374, %v360, %v370
      %v382 = vsel %vm374, %v361, %v371
      %v383 = vsel %vm374, %v362, %v372
      %v384 = vsel %vm374, %v363, %v373
      %v385 = vsel %vm374, %v364, %v354
      %v386 = vsel %vm374, %v365, %v355
      %v387 = vsel %vm374, %v366, %v356
      %v388 = vsel %vm374, %v367, %v357
      %v389 = vsel %vm374, %v368, %v358
      %v390 = vsel %vm374, %v369, %v359
      %v391 = vsel %vm374, %v370, %v360
      %v392 = vsel %vm374, %v371, %v361
      %v393 = vsel %vm374, %v372, %v362
      %v394 = vsel %vm374, %v373, %v363
      %vm395 = vcmp.ge.s32.totalorder %v264, 15
      %vm396 = vcmp.ge.s32.totalorder %v265, 15
      %v397 = vsel %vm395, 1, 0
      %v398 = vsel %vm396, 1, 0
      %vm399 = vcmp.eq.s32.totalorder %v397, 1
      %vm400 = vcmp.eq.s32.totalorder %v398, 1
      %v401 = vsel %vm399, 0.0, %v375
      %v402 = vsel %vm400, 0.0, %v385
      %v403 = vsel %vm399, 0.0, %v376
      %v404 = vsel %vm400, 0.0, %v386
      %v405 = vsel %vm399, 0.0, %v377
      %v406 = vsel %vm400, 0.0, %v387
      %v407 = vsel %vm399, 0.0, %v378
      %v408 = vsel %vm400, 0.0, %v388
      %v409 = vsel %vm399, 0.0, %v379
      %v410 = vsel %vm400, 0.0, %v389
      %v411 = vsel %vm399, 0.0, %v380
      %v412 = vsel %vm400, 0.0, %v390
      %v413 = vsel %vm399, 0.0, %v381
      %v414 = vsel %vm400, 0.0, %v391
      %v415 = vsel %vm399, 0.0, %v382
      %v416 = vsel %vm400, 0.0, %v392
      %v417 = vsel %vm399, 0.0, %v383
      %v418 = vsel %vm400, 0.0, %v393
      %v419 = vsel %vm399, 0.0, %v384
      %v420 = vsel %vm400, 0.0, %v394
      %v421 = vld [vmem:[%s183 + $0x9] sm:$0x1]
      %v422 = vlaneseq
      %v423 = vshrl.u32 %v422, 7
      %v424 = vsub.s32 0, %v423
      %v425 = vrot.slane %v421, %v424
      %v426 = vld [vmem:[%s183] sm:$0x1]
      %v427 = vlaneseq
      %v428 = vshrl.u32 %v427, 7
      %v429 = vsub.s32 0, %v428
      %v430 = vrot.slane %v426, %v429
      %v431 = vmul.f32 %v430, %v334
      %v432 = vmul.f32 %v430, %v335
      %v433 = vmul.f32 %v430, %v336
      %v434 = vmul.f32 %v430, %v337
      %v435 = vmul.f32 %v430, %v338
      %v436 = vmul.f32 %v430, %v339
      %v437 = vmul.f32 %v430, %v340
      %v438 = vmul.f32 %v430, %v341
      %v439 = vmul.f32 %v430, %v342
      %v440 = vmul.f32 %v430, %v343
      %v441 = vmul.f32 %v430, %v344
      %v442 = vmul.f32 %v430, %v345
      %v443 = vmul.f32 %v430, %v346
      %v444 = vmul.f32 %v430, %v347
      %v445 = vmul.f32 %v430, %v348
      %v446 = vmul.f32 %v430, %v349
      %v447 = vadd.f32 %v425, %v431
      %v448 = vadd.f32 %v425, %v432
      %v449 = vadd.f32 %v425, %v433
      %v450 = vadd.f32 %v425, %v434
      %v451 = vadd.f32 %v425, %v435
      %v452 = vadd.f32 %v425, %v436
      %v453 = vadd.f32 %v425, %v437
      %v454 = vadd.f32 %v425, %v438
      %v455 = vadd.f32 %v425, %v439
      %v456 = vadd.f32 %v425, %v440
      %v457 = vadd.f32 %v425, %v441
      %v458 = vadd.f32 %v425, %v442
      %v459 = vadd.f32 %v425, %v443
      %v460 = vadd.f32 %v425, %v444
      %v461 = vadd.f32 %v425, %v445
      %v462 = vadd.f32 %v425, %v446
      %v463 = vld [vmem:[%s183 + $0x1] sm:$0x1]
      %v464 = vlaneseq
      %v465 = vshrl.u32 %v464, 7
      %v466 = vsub.s32 0, %v465
      %v467 = vrot.slane %v463, %v466
      %v468 = vmul.f32 %v467, %v268
      %v469 = vmul.f32 %v467, %v269
      %v470 = vmul.f32 %v467, %v270
      %v471 = vmul.f32 %v467, %v271
      %v472 = vmul.f32 %v467, %v272
      %v473 = vmul.f32 %v467, %v273
      %v474 = vmul.f32 %v467, %v274
      %v475 = vmul.f32 %v467, %v275
      %v476 = vmul.f32 %v467, %v276
      %v477 = vmul.f32 %v467, %v277
      %v478 = vmul.f32 %v467, %v278
      %v479 = vmul.f32 %v467, %v279
      %v480 = vmul.f32 %v467, %v280
      %v481 = vmul.f32 %v467, %v281
      %v482 = vmul.f32 %v467, %v282
      %v483 = vmul.f32 %v467, %v283
      %v484 = vadd.f32 %v447, %v468
      %v485 = vadd.f32 %v448, %v469
      %v486 = vadd.f32 %v449, %v470
      %v487 = vadd.f32 %v450, %v471
      %v488 = vadd.f32 %v451, %v472
      %v489 = vadd.f32 %v452, %v473
      %v490 = vadd.f32 %v453, %v474
      %v491 = vadd.f32 %v454, %v475
      %v492 = vadd.f32 %v455, %v476
      %v493 = vadd.f32 %v456, %v477
      %v494 = vadd.f32 %v457, %v478
      %v495 = vadd.f32 %v458, %v479
      %v496 = vadd.f32 %v459, %v480
      %v497 = vadd.f32 %v460, %v481
      %v498 = vadd.f32 %v461, %v482
      %v499 = vadd.f32 %v462, %v483
      %v500 = vld [vmem:[%s183 + $0x2] sm:$0x1]
      %v501 = vlaneseq
      %v502 = vshrl.u32 %v501, 7
      %v503 = vsub.s32 0, %v502
      %v504 = vrot.slane %v500, %v503
      %v505 = vmul.f32 %v504, %v401
      %v506 = vmul.f32 %v504, %v402
      %v507 = vmul.f32 %v504, %v403
      %v508 = vmul.f32 %v504, %v404
      %v509 = vmul.f32 %v504, %v405
      %v510 = vmul.f32 %v504, %v406
      %v511 = vmul.f32 %v504, %v407
      %v512 = vmul.f32 %v504, %v408
      %v513 = vmul.f32 %v504, %v409
      %v514 = vmul.f32 %v504, %v410
      %v515 = vmul.f32 %v504, %v411
      %v516 = vmul.f32 %v504, %v412
      %v517 = vmul.f32 %v504, %v413
      %v518 = vmul.f32 %v504, %v414
      %v519 = vmul.f32 %v504, %v415
      %v520 = vmul.f32 %v504, %v416
      %v521 = vadd.f32 %v484, %v505
      %v522 = vadd.f32 %v485, %v506
      %v523 = vadd.f32 %v486, %v507
      %v524 = vadd.f32 %v487, %v508
      %v525 = vadd.f32 %v488, %v509
      %v526 = vadd.f32 %v489, %v510
      %v527 = vadd.f32 %v490, %v511
      %v528 = vadd.f32 %v491, %v512
      %v529 = vadd.f32 %v492, %v513
      %v530 = vadd.f32 %v493, %v514
      %v531 = vadd.f32 %v494, %v515
      %v532 = vadd.f32 %v495, %v516
      %v533 = vadd.f32 %v496, %v517
      %v534 = vadd.f32 %v497, %v518
      %v535 = vadd.f32 %v498, %v519
      %v536 = vadd.f32 %v499, %v520
      %v537 = vld [vmem:[%s183 + $0x3] sm:$0x1]
      %v538 = vlaneseq
      %v539 = vshrl.u32 %v538, 7
      %v540 = vsub.s32 0, %v539
      %v541 = vrot.slane %v537, %v540
      %v542 = vmul.f32 %v541, %v336
      %v543 = vmul.f32 %v541, %v337
      %v544 = vmul.f32 %v541, %v338
      %v545 = vmul.f32 %v541, %v339
      %v546 = vmul.f32 %v541, %v340
      %v547 = vmul.f32 %v541, %v341
      %v548 = vmul.f32 %v541, %v342
      %v549 = vmul.f32 %v541, %v343
      %v550 = vmul.f32 %v541, %v344
      %v551 = vmul.f32 %v541, %v345
      %v552 = vmul.f32 %v541, %v346
      %v553 = vmul.f32 %v541, %v347
      %v554 = vmul.f32 %v541, %v348
      %v555 = vmul.f32 %v541, %v349
      %v556 = vmul.f32 %v541, %v350
      %v557 = vmul.f32 %v541, %v351
      %v558 = vadd.f32 %v521, %v542
      %v559 = vadd.f32 %v522, %v543
      %v560 = vadd.f32 %v523, %v544
      %v561 = vadd.f32 %v524, %v545
      %v562 = vadd.f32 %v525, %v546
      %v563 = vadd.f32 %v526, %v547
      %v564 = vadd.f32 %v527, %v548
      %v565 = vadd.f32 %v528, %v549
      %v566 = vadd.f32 %v529, %v550
      %v567 = vadd.f32 %v530, %v551
      %v568 = vadd.f32 %v531, %v552
      %v569 = vadd.f32 %v532, %v553
      %v570 = vadd.f32 %v533, %v554
      %v571 = vadd.f32 %v534, %v555
      %v572 = vadd.f32 %v535, %v556
      %v573 = vadd.f32 %v536, %v557
      %v574 = vld [vmem:[%s183 + $0x4] sm:$0x1]
      %v575 = vlaneseq
      %v576 = vshrl.u32 %v575, 7
      %v577 = vsub.s32 0, %v576
      %v578 = vrot.slane %v574, %v577
      %v579 = vmul.f32 %v578, %v270
      %v580 = vmul.f32 %v578, %v271
      %v581 = vmul.f32 %v578, %v272
      %v582 = vmul.f32 %v578, %v273
      %v583 = vmul.f32 %v578, %v274
      %v584 = vmul.f32 %v578, %v275
      %v585 = vmul.f32 %v578, %v276
      %v586 = vmul.f32 %v578, %v277
      %v587 = vmul.f32 %v578, %v278
      %v588 = vmul.f32 %v578, %v279
      %v589 = vmul.f32 %v578, %v280
      %v590 = vmul.f32 %v578, %v281
      %v591 = vmul.f32 %v578, %v282
      %v592 = vmul.f32 %v578, %v283
      %v593 = vmul.f32 %v578, %v284
      %v594 = vmul.f32 %v578, %v285
      %v595 = vadd.f32 %v558, %v579
      %v596 = vadd.f32 %v559, %v580
      %v597 = vadd.f32 %v560, %v581
      %v598 = vadd.f32 %v561, %v582
      %v599 = vadd.f32 %v562, %v583
      %v600 = vadd.f32 %v563, %v584
      %v601 = vadd.f32 %v564, %v585
      %v602 = vadd.f32 %v565, %v586
      %v603 = vadd.f32 %v566, %v587
      %v604 = vadd.f32 %v567, %v588
      %v605 = vadd.f32 %v568, %v589
      %v606 = vadd.f32 %v569, %v590
      %v607 = vadd.f32 %v570, %v591
      %v608 = vadd.f32 %v571, %v592
      %v609 = vadd.f32 %v572, %v593
      %v610 = vadd.f32 %v573, %v594
      %v611 = vld [vmem:[%s183 + $0x5] sm:$0x1]
      %v612 = vlaneseq
      %v613 = vshrl.u32 %v612, 7
      %v614 = vsub.s32 0, %v613
      %v615 = vrot.slane %v611, %v614
      %v616 = vmul.f32 %v615, %v403
      %v617 = vmul.f32 %v615, %v404
      %v618 = vmul.f32 %v615, %v405
      %v619 = vmul.f32 %v615, %v406
      %v620 = vmul.f32 %v615, %v407
      %v621 = vmul.f32 %v615, %v408
      %v622 = vmul.f32 %v615, %v409
      %v623 = vmul.f32 %v615, %v410
      %v624 = vmul.f32 %v615, %v411
      %v625 = vmul.f32 %v615, %v412
      %v626 = vmul.f32 %v615, %v413
      %v627 = vmul.f32 %v615, %v414
      %v628 = vmul.f32 %v615, %v415
      %v629 = vmul.f32 %v615, %v416
      %v630 = vmul.f32 %v615, %v417
      %v631 = vmul.f32 %v615, %v418
      %v632 = vadd.f32 %v595, %v616
      %v633 = vadd.f32 %v596, %v617
      %v634 = vadd.f32 %v597, %v618
      %v635 = vadd.f32 %v598, %v619
      %v636 = vadd.f32 %v599, %v620
      %v637 = vadd.f32 %v600, %v621
      %v638 = vadd.f32 %v601, %v622
      %v639 = vadd.f32 %v602, %v623
      %v640 = vadd.f32 %v603, %v624
      %v641 = vadd.f32 %v604, %v625
      %v642 = vadd.f32 %v605, %v626
      %v643 = vadd.f32 %v606, %v627
      %v644 = vadd.f32 %v607, %v628
      %v645 = vadd.f32 %v608, %v629
      %v646 = vadd.f32 %v609, %v630
      %v647 = vadd.f32 %v610, %v631
      %v648 = vld [vmem:[%s183 + $0x6] sm:$0x1]
      %v649 = vlaneseq
      %v650 = vshrl.u32 %v649, 7
      %v651 = vsub.s32 0, %v650
      %v652 = vrot.slane %v648, %v651
      %v653 = vmul.f32 %v652, %v338
      %v654 = vmul.f32 %v652, %v339
      %v655 = vmul.f32 %v652, %v340
      %v656 = vmul.f32 %v652, %v341
      %v657 = vmul.f32 %v652, %v342
      %v658 = vmul.f32 %v652, %v343
      %v659 = vmul.f32 %v652, %v344
      %v660 = vmul.f32 %v652, %v345
      %v661 = vmul.f32 %v652, %v346
      %v662 = vmul.f32 %v652, %v347
      %v663 = vmul.f32 %v652, %v348
      %v664 = vmul.f32 %v652, %v349
      %v665 = vmul.f32 %v652, %v350
      %v666 = vmul.f32 %v652, %v351
      %v667 = vmul.f32 %v652, %v352
      %v668 = vmul.f32 %v652, %v353
      %v669 = vadd.f32 %v632, %v653
      %v670 = vadd.f32 %v633, %v654
      %v671 = vadd.f32 %v634, %v655
      %v672 = vadd.f32 %v635, %v656
      %v673 = vadd.f32 %v636, %v657
      %v674 = vadd.f32 %v637, %v658
      %v675 = vadd.f32 %v638, %v659
      %v676 = vadd.f32 %v639, %v660
      %v677 = vadd.f32 %v640, %v661
      %v678 = vadd.f32 %v641, %v662
      %v679 = vadd.f32 %v642, %v663
      %v680 = vadd.f32 %v643, %v664
      %v681 = vadd.f32 %v644, %v665
      %v682 = vadd.f32 %v645, %v666
      %v683 = vadd.f32 %v646, %v667
      %v684 = vadd.f32 %v647, %v668
      %v685 = vld [vmem:[%s183 + $0x7] sm:$0x1]
      %v686 = vlaneseq
      %v687 = vshrl.u32 %v686, 7
      %v688 = vsub.s32 0, %v687
      %v689 = vrot.slane %v685, %v688
      %v690 = vmul.f32 %v689, %v272
      %v691 = vmul.f32 %v689, %v273
      %v692 = vmul.f32 %v689, %v274
      %v693 = vmul.f32 %v689, %v275
      %v694 = vmul.f32 %v689, %v276
      %v695 = vmul.f32 %v689, %v277
      %v696 = vmul.f32 %v689, %v278
      %v697 = vmul.f32 %v689, %v279
      %v698 = vmul.f32 %v689, %v280
      %v699 = vmul.f32 %v689, %v281
      %v700 = vmul.f32 %v689, %v282
      %v701 = vmul.f32 %v689, %v283
      %v702 = vmul.f32 %v689, %v284
      %v703 = vmul.f32 %v689, %v285
      %v704 = vmul.f32 %v689, %v286
      %v705 = vmul.f32 %v689, %v287
      %v706 = vadd.f32 %v669, %v690
      %v707 = vadd.f32 %v670, %v691
      %v708 = vadd.f32 %v671, %v692
      %v709 = vadd.f32 %v672, %v693
      %v710 = vadd.f32 %v673, %v694
      %v711 = vadd.f32 %v674, %v695
      %v712 = vadd.f32 %v675, %v696
      %v713 = vadd.f32 %v676, %v697
      %v714 = vadd.f32 %v677, %v698
      %v715 = vadd.f32 %v678, %v699
      %v716 = vadd.f32 %v679, %v700
      %v717 = vadd.f32 %v680, %v701
      %v718 = vadd.f32 %v681, %v702
      %v719 = vadd.f32 %v682, %v703
      %v720 = vadd.f32 %v683, %v704
      %v721 = vadd.f32 %v684, %v705
      %v722 = vld [vmem:[%s183 + $0x8] sm:$0x1]
      %v723 = vlaneseq
      %v724 = vshrl.u32 %v723, 7
      %v725 = vsub.s32 0, %v724
      %v726 = vrot.slane %v722, %v725
      %v727 = vmul.f32 %v726, %v405
      %v728 = vmul.f32 %v726, %v406
      %v729 = vmul.f32 %v726, %v407
      %v730 = vmul.f32 %v726, %v408
      %v731 = vmul.f32 %v726, %v409
      %v732 = vmul.f32 %v726, %v410
      %v733 = vmul.f32 %v726, %v411
      %v734 = vmul.f32 %v726, %v412
      %v735 = vmul.f32 %v726, %v413
      %v736 = vmul.f32 %v726, %v414
      %v737 = vmul.f32 %v726, %v415
      %v738 = vmul.f32 %v726, %v416
      %v739 = vmul.f32 %v726, %v417
      %v740 = vmul.f32 %v726, %v418
      %v741 = vmul.f32 %v726, %v419
      %v742 = vmul.f32 %v726, %v420
      %v743 = vadd.f32 %v706, %v727
      %v744 = vadd.f32 %v707, %v728
      %v745 = vadd.f32 %v708, %v729
      %v746 = vadd.f32 %v709, %v730
      %v747 = vadd.f32 %v710, %v731
      %v748 = vadd.f32 %v711, %v732
      %v749 = vadd.f32 %v712, %v733
      %v750 = vadd.f32 %v713, %v734
      %v751 = vadd.f32 %v714, %v735
      %v752 = vadd.f32 %v715, %v736
      %v753 = vadd.f32 %v716, %v737
      %v754 = vadd.f32 %v717, %v738
      %v755 = vadd.f32 %v718, %v739
      %v756 = vadd.f32 %v719, %v740
      %v757 = vadd.f32 %v720, %v741
      %v758 = vadd.f32 %v721, %v742
      %s759 = scalar_lea.vmem %s191, %s266
      %760 = vst.msk [vmem:[%s759] sm:$0xff] %vm192, %v743
      %761 = vst.msk [vmem:[%s759 + $0x8] sm:$0xff] %vm192, %v744
      %762 = vst.msk [vmem:[%s759 + $0x10] sm:$0xff] %vm192, %v745
      %763 = vst.msk [vmem:[%s759 + $0x18] sm:$0xff] %vm192, %v746
      %764 = vst.msk [vmem:[%s759 + $0x20] sm:$0xff] %vm192, %v747
      %765 = vst.msk [vmem:[%s759 + $0x28] sm:$0xff] %vm192, %v748
      %766 = vst.msk [vmem:[%s759 + $0x30] sm:$0xff] %vm192, %v749
      %767 = vst.msk [vmem:[%s759 + $0x38] sm:$0xff] %vm192, %v750
      %768 = vst.msk [vmem:[%s759 + $0x40] sm:$0xff] %vm192, %v751
      %769 = vst.msk [vmem:[%s759 + $0x48] sm:$0xff] %vm192, %v752
      %770 = vst.msk [vmem:[%s759 + $0x50] sm:$0xff] %vm192, %v753
      %771 = vst.msk [vmem:[%s759 + $0x58] sm:$0xff] %vm192, %v754
      %772 = vst.msk [vmem:[%s759 + $0x60] sm:$0xff] %vm192, %v755
      %773 = vst.msk [vmem:[%s759 + $0x68] sm:$0xff] %vm192, %v756
      %774 = vst.msk [vmem:[%s759 + $0x70] sm:$0xff] %vm192, %v757
      %775 = vst.msk [vmem:[%s759 + $0x78] sm:$0xff] %vm192, %v758
      %s776 = smul.u32 8, 16
      %s777 = scalar_lea.vmem [#allocation2], %s776
      %v778 = vld [vmem:[%s777] sm:$0xff]
      %v779 = vld [vmem:[%s777 + $0x8] sm:$0xff]
      %v780 = vld [vmem:[%s777 + $0x10] sm:$0xff]
      %v781 = vld [vmem:[%s777 + $0x18] sm:$0xff]
      %v782 = vld [vmem:[%s777 + $0x20] sm:$0xff]
      %v783 = vld [vmem:[%s777 + $0x28] sm:$0xff]
      %v784 = vld [vmem:[%s777 + $0x30] sm:$0xff]
      %v785 = vld [vmem:[%s777 + $0x38] sm:$0xff]
      %v786 = vld [vmem:[%s777 + $0x40] sm:$0xff]
      %v787 = vld [vmem:[%s777 + $0x48] sm:$0xff]
      %v788 = vld [vmem:[%s777 + $0x50] sm:$0xff]
      %v789 = vld [vmem:[%s777 + $0x58] sm:$0xff]
      %v790 = vld [vmem:[%s777 + $0x60] sm:$0xff]
      %v791 = vld [vmem:[%s777 + $0x68] sm:$0xff]
      %v792 = vld [vmem:[%s777 + $0x70] sm:$0xff]
      %v793 = vld [vmem:[%s777 + $0x78] sm:$0xff]
      %v794 = vld [vmem:[%s777 + $0x80] sm:$0xff]
      %v795 = vld [vmem:[%s777 + $0x88] sm:$0xff]
      %v796 = vld [vmem:[%s777 + $0x90] sm:$0xff]
      %v797 = vld [vmem:[%s777 + $0x98] sm:$0xff]
      %v798 = vrot.slane %v778, 7
      %v799 = vrot.slane %v780, 7
      %v800 = vrot.slane %v782, 7
      %v801 = vrot.slane %v784, 7
      %v802 = vrot.slane %v786, 7
      %v803 = vrot.slane %v788, 7
      %v804 = vrot.slane %v790, 7
      %v805 = vrot.slane %v792, 7
      %v806 = vrot.slane %v794, 7
      %v807 = vrot.slane %v796, 7
      %v808 = vrot.slane %v779, 7
      %v809 = vrot.slane %v781, 7
      %v810 = vrot.slane %v783, 7
      %v811 = vrot.slane %v785, 7
      %v812 = vrot.slane %v787, 7
      %v813 = vrot.slane %v789, 7
      %v814 = vrot.slane %v791, 7
      %v815 = vrot.slane %v793, 7
      %v816 = vrot.slane %v795, 7
      %v817 = vrot.slane %v797, 7
      %v818 = vsel %vm308, %v798, %v808
      %v819 = vsel %vm308, %v799, %v809
      %v820 = vsel %vm308, %v800, %v810
      %v821 = vsel %vm308, %v801, %v811
      %v822 = vsel %vm308, %v802, %v812
      %v823 = vsel %vm308, %v803, %v813
      %v824 = vsel %vm308, %v804, %v814
      %v825 = vsel %vm308, %v805, %v815
      %v826 = vsel %vm308, %v806, %v816
      %v827 = vsel %vm308, %v807, %v817
      %v828 = vsel %vm308, %v808, %v798
      %v829 = vsel %vm308, %v809, %v799
      %v830 = vsel %vm308, %v810, %v800
      %v831 = vsel %vm308, %v811, %v801
      %v832 = vsel %vm308, %v812, %v802
      %v833 = vsel %vm308, %v813, %v803
      %v834 = vsel %vm308, %v814, %v804
      %v835 = vsel %vm308, %v815, %v805
      %v836 = vsel %vm308, %v816, %v806
      %v837 = vsel %vm308, %v817, %v807
      %v838 = vsel %vm332, 0.0, %v828
      %v839 = vsel %vm333, 0.0, %v818
      %v840 = vsel %vm332, 0.0, %v829
      %v841 = vsel %vm333, 0.0, %v819
      %v842 = vsel %vm332, 0.0, %v830
      %v843 = vsel %vm333, 0.0, %v820
      %v844 = vsel %vm332, 0.0, %v831
      %v845 = vsel %vm333, 0.0, %v821
      %v846 = vsel %vm332, 0.0, %v832
      %v847 = vsel %vm333, 0.0, %v822
      %v848 = vsel %vm332, 0.0, %v833
      %v849 = vsel %vm333, 0.0, %v823
      %v850 = vsel %vm332, 0.0, %v834
      %v851 = vsel %vm333, 0.0, %v824
      %v852 = vsel %vm332, 0.0, %v835
      %v853 = vsel %vm333, 0.0, %v825
      %v854 = vsel %vm332, 0.0, %v836
      %v855 = vsel %vm333, 0.0, %v826
      %v856 = vsel %vm332, 0.0, %v837
      %v857 = vsel %vm333, 0.0, %v827
      %v858 = vrot.slane %v778, 1
      %v859 = vrot.slane %v780, 1
      %v860 = vrot.slane %v782, 1
      %v861 = vrot.slane %v784, 1
      %v862 = vrot.slane %v786, 1
      %v863 = vrot.slane %v788, 1
      %v864 = vrot.slane %v790, 1
      %v865 = vrot.slane %v792, 1
      %v866 = vrot.slane %v794, 1
      %v867 = vrot.slane %v796, 1
      %v868 = vrot.slane %v779, 1
      %v869 = vrot.slane %v781, 1
      %v870 = vrot.slane %v783, 1
      %v871 = vrot.slane %v785, 1
      %v872 = vrot.slane %v787, 1
      %v873 = vrot.slane %v789, 1
      %v874 = vrot.slane %v791, 1
      %v875 = vrot.slane %v793, 1
      %v876 = vrot.slane %v795, 1
      %v877 = vrot.slane %v797, 1
      %v878 = vsel %vm374, %v858, %v868
      %v879 = vsel %vm374, %v859, %v869
      %v880 = vsel %vm374, %v860, %v870
      %v881 = vsel %vm374, %v861, %v871
      %v882 = vsel %vm374, %v862, %v872
      %v883 = vsel %vm374, %v863, %v873
      %v884 = vsel %vm374, %v864, %v874
      %v885 = vsel %vm374, %v865, %v875
      %v886 = vsel %vm374, %v866, %v876
      %v887 = vsel %vm374, %v867, %v877
      %v888 = vsel %vm374, %v868, %v858
      %v889 = vsel %vm374, %v869, %v859
      %v890 = vsel %vm374, %v870, %v860
      %v891 = vsel %vm374, %v871, %v861
      %v892 = vsel %vm374, %v872, %v862
      %v893 = vsel %vm374, %v873, %v863
      %v894 = vsel %vm374, %v874, %v864
      %v895 = vsel %vm374, %v875, %v865
      %v896 = vsel %vm374, %v876, %v866
      %v897 = vsel %vm374, %v877, %v867
      %v898 = vsel %vm399, 0.0, %v878
      %v899 = vsel %vm400, 0.0, %v888
      %v900 = vsel %vm399, 0.0, %v879
      %v901 = vsel %vm400, 0.0, %v889
      %v902 = vsel %vm399, 0.0, %v880
      %v903 = vsel %vm400, 0.0, %v890
      %v904 = vsel %vm399, 0.0, %v881
      %v905 = vsel %vm400, 0.0, %v891
      %v906 = vsel %vm399, 0.0, %v882
      %v907 = vsel %vm400, 0.0, %v892
      %v908 = vsel %vm399, 0.0, %v883
      %v909 = vsel %vm400, 0.0, %v893
      %v910 = vsel %vm399, 0.0, %v884
      %v911 = vsel %vm400, 0.0, %v894
      %v912 = vsel %vm399, 0.0, %v885
      %v913 = vsel %vm400, 0.0, %v895
      %v914 = vsel %vm399, 0.0, %v886
      %v915 = vsel %vm400, 0.0, %v896
      %v916 = vsel %vm399, 0.0, %v887
      %v917 = vsel %vm400, 0.0, %v897
      %v918 = vld [vmem:[%s183 + $0x9] sm:$0x1]
      %v919 = vlaneseq
      %v920 = vshrl.u32 %v919, 7
      %v921 = vsub.s32 0, %v920
      %v922 = vrot.slane %v918, %v921
      %v923 = vld [vmem:[%s183] sm:$0x1]
      %v924 = vlaneseq
      %v925 = vshrl.u32 %v924, 7
      %v926 = vsub.s32 0, %v925
      %v927 = vrot.slane %v923, %v926
      %v928 = vmul.f32 %v927, %v838
      %v929 = vmul.f32 %v927, %v839
      %v930 = vmul.f32 %v927, %v840
      %v931 = vmul.f32 %v927, %v841
      %v932 = vmul.f32 %v927, %v842
      %v933 = vmul.f32 %v927, %v843
      %v934 = vmul.f32 %v927, %v844
      %v935 = vmul.f32 %v927, %v845
      %v936 = vmul.f32 %v927, %v846
      %v937 = vmul.f32 %v927, %v847
      %v938 = vmul.f32 %v927, %v848
      %v939 = vmul.f32 %v927, %v849
      %v940 = vmul.f32 %v927, %v850
      %v941 = vmul.f32 %v927, %v851
      %v942 = vmul.f32 %v927, %v852
      %v943 = vmul.f32 %v927, %v853
      %v944 = vadd.f32 %v922, %v928
      %v945 = vadd.f32 %v922, %v929
      %v946 = vadd.f32 %v922, %v930
      %v947 = vadd.f32 %v922, %v931
      %v948 = vadd.f32 %v922, %v932
      %v949 = vadd.f32 %v922, %v933
      %v950 = vadd.f32 %v922, %v934
      %v951 = vadd.f32 %v922, %v935
      %v952 = vadd.f32 %v922, %v936
      %v953 = vadd.f32 %v922, %v937
      %v954 = vadd.f32 %v922, %v938
      %v955 = vadd.f32 %v922, %v939
      %v956 = vadd.f32 %v922, %v940
      %v957 = vadd.f32 %v922, %v941
      %v958 = vadd.f32 %v922, %v942
      %v959 = vadd.f32 %v922, %v943
      %v960 = vld [vmem:[%s183 + $0x1] sm:$0x1]
      %v961 = vlaneseq
      %v962 = vshrl.u32 %v961, 7
      %v963 = vsub.s32 0, %v962
      %v964 = vrot.slane %v960, %v963
      %v965 = vmul.f32 %v964, %v778
      %v966 = vmul.f32 %v964, %v779
      %v967 = vmul.f32 %v964, %v780
      %v968 = vmul.f32 %v964, %v781
      %v969 = vmul.f32 %v964, %v782
      %v970 = vmul.f32 %v964, %v783
      %v971 = vmul.f32 %v964, %v784
      %v972 = vmul.f32 %v964, %v785
      %v973 = vmul.f32 %v964, %v786
      %v974 = vmul.f32 %v964, %v787
      %v975 = vmul.f32 %v964, %v788
      %v976 = vmul.f32 %v964, %v789
      %v977 = vmul.f32 %v964, %v790
      %v978 = vmul.f32 %v964, %v791
      %v979 = vmul.f32 %v964, %v792
      %v980 = vmul.f32 %v964, %v793
      %v981 = vadd.f32 %v944, %v965
      %v982 = vadd.f32 %v945, %v966
      %v983 = vadd.f32 %v946, %v967
      %v984 = vadd.f32 %v947, %v968
      %v985 = vadd.f32 %v948, %v969
      %v986 = vadd.f32 %v949, %v970
      %v987 = vadd.f32 %v950, %v971
      %v988 = vadd.f32 %v951, %v972
      %v989 = vadd.f32 %v952, %v973
      %v990 = vadd.f32 %v953, %v974
      %v991 = vadd.f32 %v954, %v975
      %v992 = vadd.f32 %v955, %v976
      %v993 = vadd.f32 %v956, %v977
      %v994 = vadd.f32 %v957, %v978
      %v995 = vadd.f32 %v958, %v979
      %v996 = vadd.f32 %v959, %v980
      %v997 = vld [vmem:[%s183 + $0x2] sm:$0x1]
      %v998 = vlaneseq
      %v999 = vshrl.u32 %v998, 7
      %v1000 = vsub.s32 0, %v999
      %v1001 = vrot.slane %v997, %v1000
      %v1002 = vmul.f32 %v1001, %v898
      %v1003 = vmul.f32 %v1001, %v899
      %v1004 = vmul.f32 %v1001, %v900
      %v1005 = vmul.f32 %v1001, %v901
      %v1006 = vmul.f32 %v1001, %v902
      %v1007 = vmul.f32 %v1001, %v903
      %v1008 = vmul.f32 %v1001, %v904
      %v1009 = vmul.f32 %v1001, %v905
      %v1010 = vmul.f32 %v1001, %v906
      %v1011 = vmul.f32 %v1001, %v907
      %v1012 = vmul.f32 %v1001, %v908
      %v1013 = vmul.f32 %v1001, %v909
      %v1014 = vmul.f32 %v1001, %v910
      %v1015 = vmul.f32 %v1001, %v911
      %v1016 = vmul.f32 %v1001, %v912
      %v1017 = vmul.f32 %v1001, %v913
      %v1018 = vadd.f32 %v981, %v1002
      %v1019 = vadd.f32 %v982, %v1003
      %v1020 = vadd.f32 %v983, %v1004
      %v1021 = vadd.f32 %v984, %v1005
      %v1022 = vadd.f32 %v985, %v1006
      %v1023 = vadd.f32 %v986, %v1007
      %v1024 = vadd.f32 %v987, %v1008
      %v1025 = vadd.f32 %v988, %v1009
      %v1026 = vadd.f32 %v989, %v1010
      %v1027 = vadd.f32 %v990, %v1011
      %v1028 = vadd.f32 %v991, %v1012
      %v1029 = vadd.f32 %v992, %v1013
      %v1030 = vadd.f32 %v993, %v1014
      %v1031 = vadd.f32 %v994, %v1015
      %v1032 = vadd.f32 %v995, %v1016
      %v1033 = vadd.f32 %v996, %v1017
      %v1034 = vld [vmem:[%s183 + $0x3] sm:$0x1]
      %v1035 = vlaneseq
      %v1036 = vshrl.u32 %v1035, 7
      %v1037 = vsub.s32 0, %v1036
      %v1038 = vrot.slane %v1034, %v1037
      %v1039 = vmul.f32 %v1038, %v840
      %v1040 = vmul.f32 %v1038, %v841
      %v1041 = vmul.f32 %v1038, %v842
      %v1042 = vmul.f32 %v1038, %v843
      %v1043 = vmul.f32 %v1038, %v844
      %v1044 = vmul.f32 %v1038, %v845
      %v1045 = vmul.f32 %v1038, %v846
      %v1046 = vmul.f32 %v1038, %v847
      %v1047 = vmul.f32 %v1038, %v848
      %v1048 = vmul.f32 %v1038, %v849
      %v1049 = vmul.f32 %v1038, %v850
      %v1050 = vmul.f32 %v1038, %v851
      %v1051 = vmul.f32 %v1038, %v852
      %v1052 = vmul.f32 %v1038, %v853
      %v1053 = vmul.f32 %v1038, %v854
      %v1054 = vmul.f32 %v1038, %v855
      %v1055 = vadd.f32 %v1018, %v1039
      %v1056 = vadd.f32 %v1019, %v1040
      %v1057 = vadd.f32 %v1020, %v1041
      %v1058 = vadd.f32 %v1021, %v1042
      %v1059 = vadd.f32 %v1022, %v1043
      %v1060 = vadd.f32 %v1023, %v1044
      %v1061 = vadd.f32 %v1024, %v1045
      %v1062 = vadd.f32 %v1025, %v1046
      %v1063 = vadd.f32 %v1026, %v1047
      %v1064 = vadd.f32 %v1027, %v1048
      %v1065 = vadd.f32 %v1028, %v1049
      %v1066 = vadd.f32 %v1029, %v1050
      %v1067 = vadd.f32 %v1030, %v1051
      %v1068 = vadd.f32 %v1031, %v1052
      %v1069 = vadd.f32 %v1032, %v1053
      %v1070 = vadd.f32 %v1033, %v1054
      %v1071 = vld [vmem:[%s183 + $0x4] sm:$0x1]
      %v1072 = vlaneseq
      %v1073 = vshrl.u32 %v1072, 7
      %v1074 = vsub.s32 0, %v1073
      %v1075 = vrot.slane %v1071, %v1074
      %v1076 = vmul.f32 %v1075, %v780
      %v1077 = vmul.f32 %v1075, %v781
      %v1078 = vmul.f32 %v1075, %v782
      %v1079 = vmul.f32 %v1075, %v783
      %v1080 = vmul.f32 %v1075, %v784
      %v1081 = vmul.f32 %v1075, %v785
      %v1082 = vmul.f32 %v1075, %v786
      %v1083 = vmul.f32 %v1075, %v787
      %v1084 = vmul.f32 %v1075, %v788
      %v1085 = vmul.f32 %v1075, %v789
      %v1086 = vmul.f32 %v1075, %v790
      %v1087 = vmul.f32 %v1075, %v791
      %v1088 = vmul.f32 %v1075, %v792
      %v1089 = vmul.f32 %v1075, %v793
      %v1090 = vmul.f32 %v1075, %v794
      %v1091 = vmul.f32 %v1075, %v795
      %v1092 = vadd.f32 %v1055, %v1076
      %v1093 = vadd.f32 %v1056, %v1077
      %v1094 = vadd.f32 %v1057, %v1078
      %v1095 = vadd.f32 %v1058, %v1079
      %v1096 = vadd.f32 %v1059, %v1080
      %v1097 = vadd.f32 %v1060, %v1081
      %v1098 = vadd.f32 %v1061, %v1082
      %v1099 = vadd.f32 %v1062, %v1083
      %v1100 = vadd.f32 %v1063, %v1084
      %v1101 = vadd.f32 %v1064, %v1085
      %v1102 = vadd.f32 %v1065, %v1086
      %v1103 = vadd.f32 %v1066, %v1087
      %v1104 = vadd.f32 %v1067, %v1088
      %v1105 = vadd.f32 %v1068, %v1089
      %v1106 = vadd.f32 %v1069, %v1090
      %v1107 = vadd.f32 %v1070, %v1091
      %v1108 = vld [vmem:[%s183 + $0x5] sm:$0x1]
      %v1109 = vlaneseq
      %v1110 = vshrl.u32 %v1109, 7
      %v1111 = vsub.s32 0, %v1110
      %v1112 = vrot.slane %v1108, %v1111
      %v1113 = vmul.f32 %v1112, %v900
      %v1114 = vmul.f32 %v1112, %v901
      %v1115 = vmul.f32 %v1112, %v902
      %v1116 = vmul.f32 %v1112, %v903
      %v1117 = vmul.f32 %v1112, %v904
      %v1118 = vmul.f32 %v1112, %v905
      %v1119 = vmul.f32 %v1112, %v906
      %v1120 = vmul.f32 %v1112, %v907
      %v1121 = vmul.f32 %v1112, %v908
      %v1122 = vmul.f32 %v1112, %v909
      %v1123 = vmul.f32 %v1112, %v910
      %v1124 = vmul.f32 %v1112, %v911
      %v1125 = vmul.f32 %v1112, %v912
      %v1126 = vmul.f32 %v1112, %v913
      %v1127 = vmul.f32 %v1112, %v914
      %v1128 = vmul.f32 %v1112, %v915
      %v1129 = vadd.f32 %v1092, %v1113
      %v1130 = vadd.f32 %v1093, %v1114
      %v1131 = vadd.f32 %v1094, %v1115
      %v1132 = vadd.f32 %v1095, %v1116
      %v1133 = vadd.f32 %v1096, %v1117
      %v1134 = vadd.f32 %v1097, %v1118
      %v1135 = vadd.f32 %v1098, %v1119
      %v1136 = vadd.f32 %v1099, %v1120
      %v1137 = vadd.f32 %v1100, %v1121
      %v1138 = vadd.f32 %v1101, %v1122
      %v1139 = vadd.f32 %v1102, %v1123
      %v1140 = vadd.f32 %v1103, %v1124
      %v1141 = vadd.f32 %v1104, %v1125
      %v1142 = vadd.f32 %v1105, %v1126
      %v1143 = vadd.f32 %v1106, %v1127
      %v1144 = vadd.f32 %v1107, %v1128
      %v1145 = vld [vmem:[%s183 + $0x6] sm:$0x1]
      %v1146 = vlaneseq
      %v1147 = vshrl.u32 %v1146, 7
      %v1148 = vsub.s32 0, %v1147
      %v1149 = vrot.slane %v1145, %v1148
      %v1150 = vmul.f32 %v1149, %v842
      %v1151 = vmul.f32 %v1149, %v843
      %v1152 = vmul.f32 %v1149, %v844
      %v1153 = vmul.f32 %v1149, %v845
      %v1154 = vmul.f32 %v1149, %v846
      %v1155 = vmul.f32 %v1149, %v847
      %v1156 = vmul.f32 %v1149, %v848
      %v1157 = vmul.f32 %v1149, %v849
      %v1158 = vmul.f32 %v1149, %v850
      %v1159 = vmul.f32 %v1149, %v851
      %v1160 = vmul.f32 %v1149, %v852
      %v1161 = vmul.f32 %v1149, %v853
      %v1162 = vmul.f32 %v1149, %v854
      %v1163 = vmul.f32 %v1149, %v855
      %v1164 = vmul.f32 %v1149, %v856
      %v1165 = vmul.f32 %v1149, %v857
      %v1166 = vadd.f32 %v1129, %v1150
      %v1167 = vadd.f32 %v1130, %v1151
      %v1168 = vadd.f32 %v1131, %v1152
      %v1169 = vadd.f32 %v1132, %v1153
      %v1170 = vadd.f32 %v1133, %v1154
      %v1171 = vadd.f32 %v1134, %v1155
      %v1172 = vadd.f32 %v1135, %v1156
      %v1173 = vadd.f32 %v1136, %v1157
      %v1174 = vadd.f32 %v1137, %v1158
      %v1175 = vadd.f32 %v1138, %v1159
      %v1176 = vadd.f32 %v1139, %v1160
      %v1177 = vadd.f32 %v1140, %v1161
      %v1178 = vadd.f32 %v1141, %v1162
      %v1179 = vadd.f32 %v1142, %v1163
      %v1180 = vadd.f32 %v1143, %v1164
      %v1181 = vadd.f32 %v1144, %v1165
      %v1182 = vld [vmem:[%s183 + $0x7] sm:$0x1]
      %v1183 = vlaneseq
      %v1184 = vshrl.u32 %v1183, 7
      %v1185 = vsub.s32 0, %v1184
      %v1186 = vrot.slane %v1182, %v1185
      %v1187 = vmul.f32 %v1186, %v782
      %v1188 = vmul.f32 %v1186, %v783
      %v1189 = vmul.f32 %v1186, %v784
      %v1190 = vmul.f32 %v1186, %v785
      %v1191 = vmul.f32 %v1186, %v786
      %v1192 = vmul.f32 %v1186, %v787
      %v1193 = vmul.f32 %v1186, %v788
      %v1194 = vmul.f32 %v1186, %v789
      %v1195 = vmul.f32 %v1186, %v790
      %v1196 = vmul.f32 %v1186, %v791
      %v1197 = vmul.f32 %v1186, %v792
      %v1198 = vmul.f32 %v1186, %v793
      %v1199 = vmul.f32 %v1186, %v794
      %v1200 = vmul.f32 %v1186, %v795
      %v1201 = vmul.f32 %v1186, %v796
      %v1202 = vmul.f32 %v1186, %v797
      %v1203 = vadd.f32 %v1166, %v1187
      %v1204 = vadd.f32 %v1167, %v1188
      %v1205 = vadd.f32 %v1168, %v1189
      %v1206 = vadd.f32 %v1169, %v1190
      %v1207 = vadd.f32 %v1170, %v1191
      %v1208 = vadd.f32 %v1171, %v1192
      %v1209 = vadd.f32 %v1172, %v1193
      %v1210 = vadd.f32 %v1173, %v1194
      %v1211 = vadd.f32 %v1174, %v1195
      %v1212 = vadd.f32 %v1175, %v1196
      %v1213 = vadd.f32 %v1176, %v1197
      %v1214 = vadd.f32 %v1177, %v1198
      %v1215 = vadd.f32 %v1178, %v1199
      %v1216 = vadd.f32 %v1179, %v1200
      %v1217 = vadd.f32 %v1180, %v1201
      %v1218 = vadd.f32 %v1181, %v1202
      %v1219 = vld [vmem:[%s183 + $0x8] sm:$0x1]
      %v1220 = vlaneseq
      %v1221 = vshrl.u32 %v1220, 7
      %v1222 = vsub.s32 0, %v1221
      %v1223 = vrot.slane %v1219, %v1222
      %v1224 = vmul.f32 %v1223, %v902
      %v1225 = vmul.f32 %v1223, %v903
      %v1226 = vmul.f32 %v1223, %v904
      %v1227 = vmul.f32 %v1223, %v905
      %v1228 = vmul.f32 %v1223, %v906
      %v1229 = vmul.f32 %v1223, %v907
      %v1230 = vmul.f32 %v1223, %v908
      %v1231 = vmul.f32 %v1223, %v909
      %v1232 = vmul.f32 %v1223, %v910
      %v1233 = vmul.f32 %v1223, %v911
      %v1234 = vmul.f32 %v1223, %v912
      %v1235 = vmul.f32 %v1223, %v913
      %v1236 = vmul.f32 %v1223, %v914
      %v1237 = vmul.f32 %v1223, %v915
      %v1238 = vmul.f32 %v1223, %v916
      %v1239 = vmul.f32 %v1223, %v917
      %v1240 = vadd.f32 %v1203, %v1224
      %v1241 = vadd.f32 %v1204, %v1225
      %v1242 = vadd.f32 %v1205, %v1226
      %v1243 = vadd.f32 %v1206, %v1227
      %v1244 = vadd.f32 %v1207, %v1228
      %v1245 = vadd.f32 %v1208, %v1229
      %v1246 = vadd.f32 %v1209, %v1230
      %v1247 = vadd.f32 %v1210, %v1231
      %v1248 = vadd.f32 %v1211, %v1232
      %v1249 = vadd.f32 %v1212, %v1233
      %v1250 = vadd.f32 %v1213, %v1234
      %v1251 = vadd.f32 %v1214, %v1235
      %v1252 = vadd.f32 %v1215, %v1236
      %v1253 = vadd.f32 %v1216, %v1237
      %v1254 = vadd.f32 %v1217, %v1238
      %v1255 = vadd.f32 %v1218, %v1239
      %s1256 = scalar_lea.vmem %s191, %s776
      %1257 = vst.msk [vmem:[%s1256] sm:$0xff] %vm192, %v1240
      %1258 = vst.msk [vmem:[%s1256 + $0x8] sm:$0xff] %vm192, %v1241
      %1259 = vst.msk [vmem:[%s1256 + $0x10] sm:$0xff] %vm192, %v1242
      %1260 = vst.msk [vmem:[%s1256 + $0x18] sm:$0xff] %vm192, %v1243
      %1261 = vst.msk [vmem:[%s1256 + $0x20] sm:$0xff] %vm192, %v1244
      %1262 = vst.msk [vmem:[%s1256 + $0x28] sm:$0xff] %vm192, %v1245
      %1263 = vst.msk [vmem:[%s1256 + $0x30] sm:$0xff] %vm192, %v1246
      %1264 = vst.msk [vmem:[%s1256 + $0x38] sm:$0xff] %vm192, %v1247
      %1265 = vst.msk [vmem:[%s1256 + $0x40] sm:$0xff] %vm192, %v1248
      %1266 = vst.msk [vmem:[%s1256 + $0x48] sm:$0xff] %vm192, %v1249
      %1267 = vst.msk [vmem:[%s1256 + $0x50] sm:$0xff] %vm192, %v1250
      %1268 = vst.msk [vmem:[%s1256 + $0x58] sm:$0xff] %vm192, %v1251
      %1269 = vst.msk [vmem:[%s1256 + $0x60] sm:$0xff] %vm192, %v1252
      %1270 = vst.msk [vmem:[%s1256 + $0x68] sm:$0xff] %vm192, %v1253
      %1271 = vst.msk [vmem:[%s1256 + $0x70] sm:$0xff] %vm192, %v1254
      %1272 = vst.msk [vmem:[%s1256 + $0x78] sm:$0xff] %vm192, %v1255
      %p1273 = scmp.lt.s32.totalorder %s17, 1
      %s1274 = scalar_select %p1273, %s17, 1
      %p1275 = scmp.lt.s32.totalorder %s18, 0
      %s1276 = scalar_select %p1275, %s18, 0
      %s1277 = smul.addr %s1274, 32
      %s1278 = sadd.s32 %s1276, %s1277
      %s1279 = smul.addr %s1278, 8
      %s1280 = scalar_lea.vmem %s2, %s1279
      // Predicated region
      $region29: #{tpu_custom_call.1} parent=27 // pred_check
        %p1281 = pneg %p99
      $region30: #{tpu_custom_call.1} parent=27 // pred_check_branch
        %1283 = sbr.rel (%p1281) target = $region32
      $region31: #{tpu_custom_call.1} parent=27 // pred_region
        _
      $region32: #{tpu_custom_call.1} parent=27 // pred_fallthru
        _
    $region28: #{tpu_custom_call.1} parent=5 // pred_fallthru
      _
    %p1284 = scmp.le.s32.totalorder 2, %s8
    // Predicated region
    $region33: #{tpu_custom_call.1} parent=5 // pred_check
      %p1285 = pneg %p1284
    $region34: #{tpu_custom_call.1} parent=5 // pred_check_branch
      %1287 = sbr.rel (%p1285) target = $region36
    $region35: #{tpu_custom_call.1} parent=5 // pred_region
      %s1288 = ssub.s32 %s8, 2
      // Predicated region
      $region37: #{tpu_custom_call.1} parent=35 // pred_check
        %p1289 = pneg %p105
      $region38: #{tpu_custom_call.1} parent=35 // pred_check_branch
        %1291 = sbr.rel (%p1289) target = $region40
      $region39: #{tpu_custom_call.1} parent=35 // pred_region
        %p1292 = scmp.lt.s32.totalorder %s19, 1
        %s1293 = scalar_select %p1292, %s19, 1
        %p1294 = scmp.lt.s32.totalorder %s20, 0
        %s1295 = scalar_select %p1294, %s20, 0
        %s1296 = smul.addr %s1293, 32
        %s1297 = sadd.s32 %s1295, %s1296
        %s1298 = smul.addr %s1297, 8
        %s1299 = scalar_lea.vmem %s2, %s1298
      $region40: #{tpu_custom_call.1} parent=35 // pred_fallthru
        _
    $region36: #{tpu_custom_call.1} parent=5 // pred_fallthru
      _
  $region6: #{tpu_custom_call.1} parent=0 // loop_footer
    %s12 = sadd.s32 1, %s8
  $region7: #{tpu_custom_call.1} parent=0 // loop_footer_branch
    %7 = sbr.rel target = $region3
  $region8: #{tpu_custom_call.1} parent=0 // loop_exit
    _

</llo_original>
